<compile_context>
chip_gen: v5e
topology: v5e:2x2
jax: 0.10.0
libtpu: 0.0.40
codegen_flags: <defaults>
</compile_context>

<pallas_src>
import jax
import jax.numpy as jnp
from jax.experimental import pallas as pl
from jax.experimental.pallas import tpu as pltpu


# ------------------------------------------------------------------
# Fused kernel: BiLSTM recurrence + masked mean/last + classifier + log_softmax
# ------------------------------------------------------------------
def _bilstm_fused_kernel(xproj_ref, whh_ref, mask2_ref, wcls_ref, bc_ref,
                         out_ref, hist):
    S, B, H8 = xproj_ref.shape     # xproj[t] = x_cat[t] @ W_ih_packed + bias  (B, 8H)
    H2 = H8 // 4                   # 2*H
    H = H2 // 2
    H6 = 3 * H2                    # sigmoid-gate block width (i, f, o)

    def step(i, carry):
        h, c = carry
        # Only the h-projection sits on the serial critical path.
        g = xproj_ref[i] + jnp.dot(h.astype(jnp.bfloat16), whh_ref[...],
                                   preferred_element_type=jnp.float32)
        # gate order: [i_f i_b | f_f f_b | o_f o_b | g_f g_b]
        sig = 0.5 * jnp.tanh(0.5 * g[:, :H6]) + 0.5     # exact sigmoid, one EUP region
        i_g = sig[:, 0 * H2:1 * H2]
        f_g = sig[:, 1 * H2:2 * H2]
        o_g = sig[:, 2 * H2:3 * H2]
        g_g = jnp.tanh(g[:, H6:])                        # second EUP region
        c_new = f_g * c + i_g * g_g
        h_new = o_g * jnp.tanh(c_new)
        hist[i] = h_new                                  # one full-width (2H-lane) store
        return (h_new, c_new)

    zeros = jnp.zeros((B, H2), jnp.float32)
    jax.lax.fori_loop(0, S, step, (zeros, zeros), unroll=True)

    # ---- epilogue: history stays in VMEM, single classifier MXU push --------
    inv_s = 1.0 / S                                         # reference divides by S
    # mask2 lanes [0,H) = pad mask at t ; lanes [H,2H) = pad mask at S-1-t
    mean_fb = jnp.sum(hist[...] * mask2_ref[...], axis=0) * inv_s        # (B, 2H)
    last_fb = jnp.concatenate([hist[S - 1][:, :H],      # fwd hidden at t = S-1
                               hist[0][:, H:]], axis=-1)  # bwd hidden at step 0
    rep = jnp.concatenate([mean_fb, last_fb], axis=-1).astype(jnp.bfloat16)  # (B, 4H)

    logits = jnp.dot(rep, wcls_ref[...],
                     preferred_element_type=jnp.float32) + bc_ref[...]
    m = jnp.max(logits, axis=-1, keepdims=True)
    lse = m + jnp.log(jnp.sum(jnp.exp(logits - m), axis=-1, keepdims=True))
    out_ref[...] = logits - lse                             # log_softmax


def _fused_forward(xproj, whh_bf16, mask2, wcls_bf16, b_c):
    S, B, H8 = xproj.shape
    H2 = H8 // 4
    V = b_c.shape[-1]
    vmem = pl.BlockSpec(memory_space=pltpu.MemorySpace.VMEM)
    return pl.pallas_call(
        _bilstm_fused_kernel,
        out_shape=jax.ShapeDtypeStruct((B, V), jnp.float32),
        in_specs=[vmem] * 5,
        out_specs=vmem,
        scratch_shapes=[
            pltpu.VMEM((S, B, H2), jnp.float32),   # hidden history [h_f | h_b]
        ],
    )(xproj, whh_bf16, mask2, wcls_bf16, b_c)


# ------------------------------------------------------------------
# Weight packing (done once per call in the jitted wrapper; tiny arrays)
# ------------------------------------------------------------------
def _pack_recurrence_weights(w_ih_f, w_ih_b, w_hh_f, w_hh_b, b_f, b_b):
    """Block-diagonal, gate-grouped weights.

    Operand layouts : x-stream  [x_f | x_b]  (B, 2E),  h-stream [h_f | h_b] (B, 2H)
    Column order    : [i_f i_b | f_f f_b | o_f o_b | g_f g_b]   (8H)
    (PyTorch LSTMCell gate order is i, f, g, o -> remapped to i, f, o, g so the
     three sigmoid gates are lane-contiguous ahead of the single tanh gate.)
    """
    E = w_ih_f.shape[0]
    H = w_hh_f.shape[0]
    zE = jnp.zeros((E, H), jnp.float32)
    zH = jnp.zeros((H, H), jnp.float32)
    gate_order = (0, 1, 3, 2)                 # i, f, o, g
    wih_cols, whh_cols, b_cols = [], [], []
    for k in gate_order:
        sl = slice(k * H, (k + 1) * H)
        wih_cols += [jnp.concatenate([w_ih_f[:, sl], zE], axis=0),
                     jnp.concatenate([zE, w_ih_b[:, sl]], axis=0)]
        whh_cols += [jnp.concatenate([w_hh_f[:, sl], zH], axis=0),
                     jnp.concatenate([zH, w_hh_b[:, sl]], axis=0)]
        b_cols += [b_f[:, sl], b_b[:, sl]]
    w_ih = jnp.concatenate(wih_cols, axis=1)  # (2E, 8H)
    w_hh = jnp.concatenate(whh_cols, axis=1)  # (2H, 8H)
    b = jnp.concatenate(b_cols, axis=1)       # (1, 8H)
    return w_ih, w_hh, b


# ------------------------------------------------------------------
# Full forward (embedding gather / hoisted x-proj / mask packing stay in XLA)
# ------------------------------------------------------------------
def bilstm_decoder_forward(seq, params):
    B, S = seq.shape
    H = params["w_hh_f"].shape[0]
    V = params["b_c"].shape[-1]
    hi = jax.lax.Precision.HIGHEST

    # embed + tanh (eval-mode dropout == identity); gather in time-major order.
    seq_t = seq.T                                                        # (S, B)
    emb_f = jnp.tanh(jnp.take(params["embed"], seq_t, axis=0)
                     ).astype(jnp.float32)                               # (S, B, E)
    rev_idx = (-jnp.arange(S)) % S                                       # [0, S-1, ..., 1]
    emb_b = jnp.take(emb_f, rev_idx, axis=0)                             # seq_emb[-i] stream
    x_cat = jnp.concatenate([emb_f, emb_b], axis=-1)                     # (S, B, 2E)

    w_ih_p, w_hh_p, b_p = _pack_recurrence_weights(
        params["w_ih_f"], params["w_ih_b"],
        params["w_hh_f"], params["w_hh_b"],
        params["b_f"], params["b_b"])

    # Hoisted input projection + bias: one batched GEMM, off the serial path.
    xproj = jnp.dot(x_cat, w_ih_p, precision=hi) + b_p                   # (S, B, 8H)

    # Combined mask: fwd pad mask at t in lanes [0,H), time-reversed in [H,2H).
    mask_t = (seq_t > 0).astype(jnp.float32)                             # (S, B)
    mask2 = jnp.concatenate(
        [jnp.broadcast_to(mask_t[:, :, None], (S, B, H)),
         jnp.broadcast_to(mask_t[::-1][:, :, None], (S, B, H))], axis=-1)

    # tiled classifier: every V-tile of the rep is identical -> pre-sum weight
    w_cls = params["w_c_t"].reshape(V, 4 * H, V).sum(axis=0)             # (4H, V)

    log_probs = _fused_forward(xproj,
                               w_hh_p.astype(jnp.bfloat16),
                               mask2,
                               w_cls.astype(jnp.bfloat16),
                               params["b_c"])

    # softmax over a singleton dim in the reference -> weights identically 1.0
    attention_weights = jnp.ones((B, V, S), jnp.float32)
    return log_probs, attention_weights


# ------------------------------------------------------------------
# Parameter init (reference-like layout) + pure-JAX reference for validation
# ------------------------------------------------------------------
def init_params(key, input_vocab, output_vocab, embed_dim, hidden_dim):
    ks = jax.random.split(key, 12)
    s = 0.1
    E, H, Vo = embed_dim, hidden_dim, output_vocab
    return {
        "embed":       jax.random.normal(ks[0], (input_vocab, E), jnp.float32) * s,
        # embed_label / attn exist in the module but provably never affect outputs
        "embed_label": jax.random.normal(ks[1], (Vo, E), jnp.float32) * s,
        "attn":        jax.random.normal(ks[2], (E, 2 * H), jnp.float32) * s,
        # LSTMCell weights stored pre-transposed: (in, 4H) / (H, 4H); biases pre-summed
        "w_ih_f": jax.random.normal(ks[3], (E, 4 * H), jnp.float32) * s,
        "w_hh_f": jax.random.normal(ks[4], (H, 4 * H), jnp.float32) * s,
        "b_f":    jax.random.normal(ks[5], (1, 4 * H), jnp.float32) * s,
        "w_ih_b": jax.random.normal(ks[6], (E, 4 * H), jnp.float32) * s,
        "w_hh_b": jax.random.normal(ks[7], (H, 4 * H), jnp.float32) * s,
        "b_b":    jax.random.normal(ks[8], (1, 4 * H), jnp.float32) * s,
        # classifier: Linear(Vo*4H -> Vo), stored as transposed weight (Vo*4H, Vo)
        "w_c_t":  jax.random.normal(ks[9], (Vo * 4 * H, Vo), jnp.float32) * s,
        "b_c":    jax.random.normal(ks[10], (1, Vo), jnp.float32) * s,
    }


def _reference_forward(seq, params):
    """Pure-JAX mirror of the PyTorch forward (for correctness checking)."""
    B, S = seq.shape
    H = params["w_hh_f"].shape[0]
    V = params["b_c"].shape[-1]
    hi = jax.lax.Precision.HIGHEST
    emb = jnp.tanh(jnp.take(params["embed"], seq, axis=0))
    seq_emb = jnp.transpose(emb, (1, 0, 2))                       # (S, B, E)
    pad_mask = (seq > 0).astype(jnp.float32)                      # (B, S)

    def cell(x, h, c, wi, wh, b):
        g = jnp.dot(x, wi, precision=hi) + jnp.dot(h, wh, precision=hi) + b
        i_g = jax.nn.sigmoid(g[:, 0 * H:1 * H])
        f_g = jax.nn.sigmoid(g[:, 1 * H:2 * H])
        g_g = jnp.tanh(g[:, 2 * H:3 * H])
        o_g = jax.nn.sigmoid(g[:, 3 * H:4 * H])
        c = f_g * c + i_g * g_g
        return o_g * jnp.tanh(c), c

    hf = cf = hb = cb = jnp.zeros((B, H), jnp.float32)
    fouts, bouts = [], []
    for i in range(S):
        hf, cf = cell(seq_emb[i], hf, cf,
                      params["w_ih_f"], params["w_hh_f"], params["b_f"])
        hb, cb = cell(seq_emb[(S - i) % S], hb, cb,
                      params["w_ih_b"], params["w_hh_b"], params["b_b"])
        fouts.append(hf)
        bouts.append(hb)
    bouts = bouts[::-1]
    seq_repr = jnp.concatenate([jnp.stack(fouts), jnp.stack(bouts)], axis=-1)
    masked = seq_repr * pad_mask.T[:, :, None]
    rep = jnp.concatenate([masked.mean(axis=0), seq_repr[-1]], axis=-1)    # (B, 4H)
    tiled = jnp.concatenate([rep] * V, axis=-1)                            # (B, V*4H)
    logits = jnp.dot(tiled, params["w_c_t"], precision=hi) + params["b_c"]
    return jax.nn.log_softmax(logits, axis=-1)


if __name__ == "__main__":
    B, S = 2, 8
    INPUT_VOCAB, OUTPUT_VOCAB = 20, 4
    EMBED_DIM, HIDDEN_DIM = 32, 32

    key = jax.random.PRNGKey(0)
    k_seq, k_par = jax.random.split(key)
    seq = jax.random.randint(k_seq, (B, S), 0, INPUT_VOCAB, dtype=jnp.int32)
    params = init_params(k_par, INPUT_VOCAB, OUTPUT_VOCAB, EMBED_DIM, HIDDEN_DIM)

    fwd = jax.jit(bilstm_decoder_forward)
    log_probs, attn_w = fwd(seq, params)
    jax.block_until_ready(log_probs)
    jax.block_until_ready(attn_w)

    assert log_probs.shape == (B, OUTPUT_VOCAB)
    assert attn_w.shape == (B, OUTPUT_VOCAB, S)
    assert bool(jnp.all(jnp.isfinite(log_probs)))

    ref_lp = jax.jit(_reference_forward)(seq, params)
    assert bool(jnp.allclose(log_probs, ref_lp, rtol=3e-2, atol=3e-2)), (
        "Pallas kernel output mismatch vs pure-JAX reference")

    print("KERNEL_OK")
</pallas_src>

<mosaic_0001>
module attributes {stable_mosaic.version = 11 : i64} {
  func.func @_bilstm_fused_kernel(%arg0: memref<8x2x256xf32, #tpu.memory_space<vmem>>, %arg1: memref<64x256xbf16, #tpu.memory_space<vmem>>, %arg2: memref<8x2x64xf32, #tpu.memory_space<vmem>>, %arg3: memref<128x4xbf16, #tpu.memory_space<vmem>>, %arg4: memref<1x4xf32, #tpu.memory_space<vmem>>, %arg5: memref<2x4xf32, #tpu.memory_space<vmem>>, %arg6: memref<8x2x64xf32, #tpu.memory_space<vmem>>) attributes {dimension_semantics = [], scalar_prefetch = 0 : i64, scratch_operands = 1 : i64, tpu.core_type = #tpu.core_type<tc>} {
    %cst = arith.constant 0.000000e+00 : f32
    %0 = vector.broadcast %cst : f32 to vector<2x64xf32>
    %c0_i32 = arith.constant 0 : i32
    %1 = arith.index_cast %c0_i32 : i32 to index
    %c0 = arith.constant 0 : index
    %c0_0 = arith.constant 0 : index
    %2 = vector.load %arg0[%1, %c0, %c0_0] : memref<8x2x256xf32, #tpu.memory_space<vmem>>, vector<1x2x256xf32>
    %3 = vector.shape_cast %2 : vector<1x2x256xf32> to vector<2x256xf32>
    %4 = arith.truncf %0 : vector<2x64xf32> to vector<2x64xbf16>
    %c0_1 = arith.constant 0 : index
    %c0_2 = arith.constant 0 : index
    %5 = vector.load %arg1[%c0_1, %c0_2] : memref<64x256xbf16, #tpu.memory_space<vmem>>, vector<64x256xbf16>
    %cst_3 = arith.constant dense<0.000000e+00> : vector<2x256xf32>
    %6 = tpu.matmul %4, %5, %cst_3 {dimension_numbers = #tpu.dot_dimension_numbers<[1], [0], [0], [1], [0, 0, 1, 1], [], []>} : vector<2x64xbf16>, vector<64x256xbf16>, vector<2x256xf32> -> vector<2x256xf32>
    %7 = arith.addf %3, %6 : vector<2x256xf32>
    %8 = vector.extract_strided_slice %7 {offsets = [0, 0], sizes = [2, 192], strides = [1, 1]} : vector<2x256xf32> to vector<2x192xf32>
    %cst_4 = arith.constant 5.000000e-01 : f32
    %9 = vector.broadcast %cst_4 : f32 to vector<2x192xf32>
    %10 = arith.mulf %9, %8 : vector<2x192xf32>
    %11 = math.tanh %10 : vector<2x192xf32>
    %cst_5 = arith.constant 5.000000e-01 : f32
    %12 = vector.broadcast %cst_5 : f32 to vector<2x192xf32>
    %13 = arith.mulf %12, %11 : vector<2x192xf32>
    %cst_6 = arith.constant 5.000000e-01 : f32
    %14 = vector.broadcast %cst_6 : f32 to vector<2x192xf32>
    %15 = arith.addf %13, %14 : vector<2x192xf32>
    %16 = vector.extract_strided_slice %15 {offsets = [0, 0], sizes = [2, 64], strides = [1, 1]} : vector<2x192xf32> to vector<2x64xf32>
    %17 = vector.extract_strided_slice %15 {offsets = [0, 64], sizes = [2, 64], strides = [1, 1]} : vector<2x192xf32> to vector<2x64xf32>
    %18 = vector.extract_strided_slice %15 {offsets = [0, 128], sizes = [2, 64], strides = [1, 1]} : vector<2x192xf32> to vector<2x64xf32>
    %19 = vector.extract_strided_slice %7 {offsets = [0, 192], sizes = [2, 64], strides = [1, 1]} : vector<2x256xf32> to vector<2x64xf32>
    %20 = math.tanh %19 : vector<2x64xf32>
    %21 = arith.mulf %17, %0 : vector<2x64xf32>
    %22 = arith.mulf %16, %20 : vector<2x64xf32>
    %23 = arith.addf %21, %22 : vector<2x64xf32>
    %24 = math.tanh %23 : vector<2x64xf32>
    %25 = arith.mulf %18, %24 : vector<2x64xf32>
    %26 = arith.index_cast %c0_i32 : i32 to index
    %c0_7 = arith.constant 0 : index
    %c0_8 = arith.constant 0 : index
    %27 = vector.load %arg6[%26, %c0_7, %c0_8] : memref<8x2x64xf32, #tpu.memory_space<vmem>>, vector<1x2x64xf32>
    %28 = vector.shape_cast %27 : vector<1x2x64xf32> to vector<2x64xf32>
    %29 = vector.shape_cast %25 : vector<2x64xf32> to vector<1x2x64xf32>
    tpu.vector_store %arg6[%26, %c0_7, %c0_8], %29 {strides = array<i32>} : memref<8x2x64xf32, #tpu.memory_space<vmem>>, vector<1x2x64xf32>,
    %c1_i32 = arith.constant 1 : i32
    %30 = arith.index_cast %c1_i32 : i32 to index
    %c0_9 = arith.constant 0 : index
    %c0_10 = arith.constant 0 : index
    %31 = vector.load %arg0[%30, %c0_9, %c0_10] : memref<8x2x256xf32, #tpu.memory_space<vmem>>, vector<1x2x256xf32>
    %32 = vector.shape_cast %31 : vector<1x2x256xf32> to vector<2x256xf32>
    %33 = arith.truncf %25 : vector<2x64xf32> to vector<2x64xbf16>
    %c0_11 = arith.constant 0 : index
    %c0_12 = arith.constant 0 : index
    %34 = vector.load %arg1[%c0_11, %c0_12] : memref<64x256xbf16, #tpu.memory_space<vmem>>, vector<64x256xbf16>
    %cst_13 = arith.constant dense<0.000000e+00> : vector<2x256xf32>
    %35 = tpu.matmul %33, %34, %cst_13 {dimension_numbers = #tpu.dot_dimension_numbers<[1], [0], [0], [1], [0, 0, 1, 1], [], []>} : vector<2x64xbf16>, vector<64x256xbf16>, vector<2x256xf32> -> vector<2x256xf32>
    %36 = arith.addf %32, %35 : vector<2x256xf32>
    %37 = vector.extract_strided_slice %36 {offsets = [0, 0], sizes = [2, 192], strides = [1, 1]} : vector<2x256xf32> to vector<2x192xf32>
    %cst_14 = arith.constant 5.000000e-01 : f32
    %38 = vector.broadcast %cst_14 : f32 to vector<2x192xf32>
    %39 = arith.mulf %38, %37 : vector<2x192xf32>
    %40 = math.tanh %39 : vector<2x192xf32>
    %cst_15 = arith.constant 5.000000e-01 : f32
    %41 = vector.broadcast %cst_15 : f32 to vector<2x192xf32>
    %42 = arith.mulf %41, %40 : vector<2x192xf32>
    %cst_16 = arith.constant 5.000000e-01 : f32
    %43 = vector.broadcast %cst_16 : f32 to vector<2x192xf32>
    %44 = arith.addf %42, %43 : vector<2x192xf32>
    %45 = vector.extract_strided_slice %44 {offsets = [0, 0], sizes = [2, 64], strides = [1, 1]} : vector<2x192xf32> to vector<2x64xf32>
    %46 = vector.extract_strided_slice %44 {offsets = [0, 64], sizes = [2, 64], strides = [1, 1]} : vector<2x192xf32> to vector<2x64xf32>
    %47 = vector.extract_strided_slice %44 {offsets = [0, 128], sizes = [2, 64], strides = [1, 1]} : vector<2x192xf32> to vector<2x64xf32>
    %48 = vector.extract_strided_slice %36 {offsets = [0, 192], sizes = [2, 64], strides = [1, 1]} : vector<2x256xf32> to vector<2x64xf32>
    %49 = math.tanh %48 : vector<2x64xf32>
    %50 = arith.mulf %46, %23 : vector<2x64xf32>
    %51 = arith.mulf %45, %49 : vector<2x64xf32>
    %52 = arith.addf %50, %51 : vector<2x64xf32>
    %53 = math.tanh %52 : vector<2x64xf32>
    %54 = arith.mulf %47, %53 : vector<2x64xf32>
    %55 = arith.index_cast %c1_i32 : i32 to index
    %c0_17 = arith.constant 0 : index
    %c0_18 = arith.constant 0 : index
    %56 = vector.load %arg6[%55, %c0_17, %c0_18] : memref<8x2x64xf32, #tpu.memory_space<vmem>>, vector<1x2x64xf32>
    %57 = vector.shape_cast %56 : vector<1x2x64xf32> to vector<2x64xf32>
    %58 = vector.shape_cast %54 : vector<2x64xf32> to vector<1x2x64xf32>
    tpu.vector_store %arg6[%55, %c0_17, %c0_18], %58 {strides = array<i32>} : memref<8x2x64xf32, #tpu.memory_space<vmem>>, vector<1x2x64xf32>,
    %c2_i32 = arith.constant 2 : i32
    %59 = arith.index_cast %c2_i32 : i32 to index
    %c0_19 = arith.constant 0 : index
    %c0_20 = arith.constant 0 : index
    %60 = vector.load %arg0[%59, %c0_19, %c0_20] : memref<8x2x256xf32, #tpu.memory_space<vmem>>, vector<1x2x256xf32>
    %61 = vector.shape_cast %60 : vector<1x2x256xf32> to vector<2x256xf32>
    %62 = arith.truncf %54 : vector<2x64xf32> to vector<2x64xbf16>
    %c0_21 = arith.constant 0 : index
    %c0_22 = arith.constant 0 : index
    %63 = vector.load %arg1[%c0_21, %c0_22] : memref<64x256xbf16, #tpu.memory_space<vmem>>, vector<64x256xbf16>
    %cst_23 = arith.constant dense<0.000000e+00> : vector<2x256xf32>
    %64 = tpu.matmul %62, %63, %cst_23 {dimension_numbers = #tpu.dot_dimension_numbers<[1], [0], [0], [1], [0, 0, 1, 1], [], []>} : vector<2x64xbf16>, vector<64x256xbf16>, vector<2x256xf32> -> vector<2x256xf32>
    %65 = arith.addf %61, %64 : vector<2x256xf32>
    %66 = vector.extract_strided_slice %65 {offsets = [0, 0], sizes = [2, 192], strides = [1, 1]} : vector<2x256xf32> to vector<2x192xf32>
    %cst_24 = arith.constant 5.000000e-01 : f32
    %67 = vector.broadcast %cst_24 : f32 to vector<2x192xf32>
    %68 = arith.mulf %67, %66 : vector<2x192xf32>
    %69 = math.tanh %68 : vector<2x192xf32>
    %cst_25 = arith.constant 5.000000e-01 : f32
    %70 = vector.broadcast %cst_25 : f32 to vector<2x192xf32>
    %71 = arith.mulf %70, %69 : vector<2x192xf32>
    %cst_26 = arith.constant 5.000000e-01 : f32
    %72 = vector.broadcast %cst_26 : f32 to vector<2x192xf32>
    %73 = arith.addf %71, %72 : vector<2x192xf32>
    %74 = vector.extract_strided_slice %73 {offsets = [0, 0], sizes = [2, 64], strides = [1, 1]} : vector<2x192xf32> to vector<2x64xf32>
    %75 = vector.extract_strided_slice %73 {offsets = [0, 64], sizes = [2, 64], strides = [1, 1]} : vector<2x192xf32> to vector<2x64xf32>
    %76 = vector.extract_strided_slice %73 {offsets = [0, 128], sizes = [2, 64], strides = [1, 1]} : vector<2x192xf32> to vector<2x64xf32>
    %77 = vector.extract_strided_slice %65 {offsets = [0, 192], sizes = [2, 64], strides = [1, 1]} : vector<2x256xf32> to vector<2x64xf32>
    %78 = math.tanh %77 : vector<2x64xf32>
    %79 = arith.mulf %75, %52 : vector<2x64xf32>
    %80 = arith.mulf %74, %78 : vector<2x64xf32>
    %81 = arith.addf %79, %80 : vector<2x64xf32>
    %82 = math.tanh %81 : vector<2x64xf32>
    %83 = arith.mulf %76, %82 : vector<2x64xf32>
    %84 = arith.index_cast %c2_i32 : i32 to index
    %c0_27 = arith.constant 0 : index
    %c0_28 = arith.constant 0 : index
    %85 = vector.load %arg6[%84, %c0_27, %c0_28] : memref<8x2x64xf32, #tpu.memory_space<vmem>>, vector<1x2x64xf32>
    %86 = vector.shape_cast %85 : vector<1x2x64xf32> to vector<2x64xf32>
    %87 = vector.shape_cast %83 : vector<2x64xf32> to vector<1x2x64xf32>
    tpu.vector_store %arg6[%84, %c0_27, %c0_28], %87 {strides = array<i32>} : memref<8x2x64xf32, #tpu.memory_space<vmem>>, vector<1x2x64xf32>,
    %c3_i32 = arith.constant 3 : i32
    %88 = arith.index_cast %c3_i32 : i32 to index
    %c0_29 = arith.constant 0 : index
    %c0_30 = arith.constant 0 : index
    %89 = vector.load %arg0[%88, %c0_29, %c0_30] : memref<8x2x256xf32, #tpu.memory_space<vmem>>, vector<1x2x256xf32>
    %90 = vector.shape_cast %89 : vector<1x2x256xf32> to vector<2x256xf32>
    %91 = arith.truncf %83 : vector<2x64xf32> to vector<2x64xbf16>
    %c0_31 = arith.constant 0 : index
    %c0_32 = arith.constant 0 : index
    %92 = vector.load %arg1[%c0_31, %c0_32] : memref<64x256xbf16, #tpu.memory_space<vmem>>, vector<64x256xbf16>
    %cst_33 = arith.constant dense<0.000000e+00> : vector<2x256xf32>
    %93 = tpu.matmul %91, %92, %cst_33 {dimension_numbers = #tpu.dot_dimension_numbers<[1], [0], [0], [1], [0, 0, 1, 1], [], []>} : vector<2x64xbf16>, vector<64x256xbf16>, vector<2x256xf32> -> vector<2x256xf32>
    %94 = arith.addf %90, %93 : vector<2x256xf32>
    %95 = vector.extract_strided_slice %94 {offsets = [0, 0], sizes = [2, 192], strides = [1, 1]} : vector<2x256xf32> to vector<2x192xf32>
    %cst_34 = arith.constant 5.000000e-01 : f32
    %96 = vector.broadcast %cst_34 : f32 to vector<2x192xf32>
    %97 = arith.mulf %96, %95 : vector<2x192xf32>
    %98 = math.tanh %97 : vector<2x192xf32>
    %cst_35 = arith.constant 5.000000e-01 : f32
    %99 = vector.broadcast %cst_35 : f32 to vector<2x192xf32>
    %100 = arith.mulf %99, %98 : vector<2x192xf32>
    %cst_36 = arith.constant 5.000000e-01 : f32
    %101 = vector.broadcast %cst_36 : f32 to vector<2x192xf32>
    %102 = arith.addf %100, %101 : vector<2x192xf32>
    %103 = vector.extract_strided_slice %102 {offsets = [0, 0], sizes = [2, 64], strides = [1, 1]} : vector<2x192xf32> to vector<2x64xf32>
    %104 = vector.extract_strided_slice %102 {offsets = [0, 64], sizes = [2, 64], strides = [1, 1]} : vector<2x192xf32> to vector<2x64xf32>
    %105 = vector.extract_strided_slice %102 {offsets = [0, 128], sizes = [2, 64], strides = [1, 1]} : vector<2x192xf32> to vector<2x64xf32>
    %106 = vector.extract_strided_slice %94 {offsets = [0, 192], sizes = [2, 64], strides = [1, 1]} : vector<2x256xf32> to vector<2x64xf32>
    %107 = math.tanh %106 : vector<2x64xf32>
    %108 = arith.mulf %104, %81 : vector<2x64xf32>
    %109 = arith.mulf %103, %107 : vector<2x64xf32>
    %110 = arith.addf %108, %109 : vector<2x64xf32>
    %111 = math.tanh %110 : vector<2x64xf32>
    %112 = arith.mulf %105, %111 : vector<2x64xf32>
    %113 = arith.index_cast %c3_i32 : i32 to index
    %c0_37 = arith.constant 0 : index
    %c0_38 = arith.constant 0 : index
    %114 = vector.load %arg6[%113, %c0_37, %c0_38] : memref<8x2x64xf32, #tpu.memory_space<vmem>>, vector<1x2x64xf32>
    %115 = vector.shape_cast %114 : vector<1x2x64xf32> to vector<2x64xf32>
    %116 = vector.shape_cast %112 : vector<2x64xf32> to vector<1x2x64xf32>
    tpu.vector_store %arg6[%113, %c0_37, %c0_38], %116 {strides = array<i32>} : memref<8x2x64xf32, #tpu.memory_space<vmem>>, vector<1x2x64xf32>,
    %c4_i32 = arith.constant 4 : i32
    %117 = arith.index_cast %c4_i32 : i32 to index
    %c0_39 = arith.constant 0 : index
    %c0_40 = arith.constant 0 : index
    %118 = vector.load %arg0[%117, %c0_39, %c0_40] : memref<8x2x256xf32, #tpu.memory_space<vmem>>, vector<1x2x256xf32>
    %119 = vector.shape_cast %118 : vector<1x2x256xf32> to vector<2x256xf32>
    %120 = arith.truncf %112 : vector<2x64xf32> to vector<2x64xbf16>
    %c0_41 = arith.constant 0 : index
    %c0_42 = arith.constant 0 : index
    %121 = vector.load %arg1[%c0_41, %c0_42] : memref<64x256xbf16, #tpu.memory_space<vmem>>, vector<64x256xbf16>
    %cst_43 = arith.constant dense<0.000000e+00> : vector<2x256xf32>
    %122 = tpu.matmul %120, %121, %cst_43 {dimension_numbers = #tpu.dot_dimension_numbers<[1], [0], [0], [1], [0, 0, 1, 1], [], []>} : vector<2x64xbf16>, vector<64x256xbf16>, vector<2x256xf32> -> vector<2x256xf32>
    %123 = arith.addf %119, %122 : vector<2x256xf32>
    %124 = vector.extract_strided_slice %123 {offsets = [0, 0], sizes = [2, 192], strides = [1, 1]} : vector<2x256xf32> to vector<2x192xf32>
    %cst_44 = arith.constant 5.000000e-01 : f32
    %125 = vector.broadcast %cst_44 : f32 to vector<2x192xf32>
    %126 = arith.mulf %125, %124 : vector<2x192xf32>
    %127 = math.tanh %126 : vector<2x192xf32>
    %cst_45 = arith.constant 5.000000e-01 : f32
    %128 = vector.broadcast %cst_45 : f32 to vector<2x192xf32>
    %129 = arith.mulf %128, %127 : vector<2x192xf32>
    %cst_46 = arith.constant 5.000000e-01 : f32
    %130 = vector.broadcast %cst_46 : f32 to vector<2x192xf32>
    %131 = arith.addf %129, %130 : vector<2x192xf32>
    %132 = vector.extract_strided_slice %131 {offsets = [0, 0], sizes = [2, 64], strides = [1, 1]} : vector<2x192xf32> to vector<2x64xf32>
    %133 = vector.extract_strided_slice %131 {offsets = [0, 64], sizes = [2, 64], strides = [1, 1]} : vector<2x192xf32> to vector<2x64xf32>
    %134 = vector.extract_strided_slice %131 {offsets = [0, 128], sizes = [2, 64], strides = [1, 1]} : vector<2x192xf32> to vector<2x64xf32>
    %135 = vector.extract_strided_slice %123 {offsets = [0, 192], sizes = [2, 64], strides = [1, 1]} : vector<2x256xf32> to vector<2x64xf32>
    %136 = math.tanh %135 : vector<2x64xf32>
    %137 = arith.mulf %133, %110 : vector<2x64xf32>
    %138 = arith.mulf %132, %136 : vector<2x64xf32>
    %139 = arith.addf %137, %138 : vector<2x64xf32>
    %140 = math.tanh %139 : vector<2x64xf32>
    %141 = arith.mulf %134, %140 : vector<2x64xf32>
    %142 = arith.index_cast %c4_i32 : i32 to index
    %c0_47 = arith.constant 0 : index
    %c0_48 = arith.constant 0 : index
    %143 = vector.load %arg6[%142, %c0_47, %c0_48] : memref<8x2x64xf32, #tpu.memory_space<vmem>>, vector<1x2x64xf32>
    %144 = vector.shape_cast %143 : vector<1x2x64xf32> to vector<2x64xf32>
    %145 = vector.shape_cast %141 : vector<2x64xf32> to vector<1x2x64xf32>
    tpu.vector_store %arg6[%142, %c0_47, %c0_48], %145 {strides = array<i32>} : memref<8x2x64xf32, #tpu.memory_space<vmem>>, vector<1x2x64xf32>,
    %c5_i32 = arith.constant 5 : i32
    %146 = arith.index_cast %c5_i32 : i32 to index
    %c0_49 = arith.constant 0 : index
    %c0_50 = arith.constant 0 : index
    %147 = vector.load %arg0[%146, %c0_49, %c0_50] : memref<8x2x256xf32, #tpu.memory_space<vmem>>, vector<1x2x256xf32>
    %148 = vector.shape_cast %147 : vector<1x2x256xf32> to vector<2x256xf32>
    %149 = arith.truncf %141 : vector<2x64xf32> to vector<2x64xbf16>
    %c0_51 = arith.constant 0 : index
    %c0_52 = arith.constant 0 : index
    %150 = vector.load %arg1[%c0_51, %c0_52] : memref<64x256xbf16, #tpu.memory_space<vmem>>, vector<64x256xbf16>
    %cst_53 = arith.constant dense<0.000000e+00> : vector<2x256xf32>
    %151 = tpu.matmul %149, %150, %cst_53 {dimension_numbers = #tpu.dot_dimension_numbers<[1], [0], [0], [1], [0, 0, 1, 1], [], []>} : vector<2x64xbf16>, vector<64x256xbf16>, vector<2x256xf32> -> vector<2x256xf32>
    %152 = arith.addf %148, %151 : vector<2x256xf32>
    %153 = vector.extract_strided_slice %152 {offsets = [0, 0], sizes = [2, 192], strides = [1, 1]} : vector<2x256xf32> to vector<2x192xf32>
    %cst_54 = arith.constant 5.000000e-01 : f32
    %154 = vector.broadcast %cst_54 : f32 to vector<2x192xf32>
    %155 = arith.mulf %154, %153 : vector<2x192xf32>
    %156 = math.tanh %155 : vector<2x192xf32>
    %cst_55 = arith.constant 5.000000e-01 : f32
    %157 = vector.broadcast %cst_55 : f32 to vector<2x192xf32>
    %158 = arith.mulf %157, %156 : vector<2x192xf32>
    %cst_56 = arith.constant 5.000000e-01 : f32
    %159 = vector.broadcast %cst_56 : f32 to vector<2x192xf32>
    %160 = arith.addf %158, %159 : vector<2x192xf32>
    %161 = vector.extract_strided_slice %160 {offsets = [0, 0], sizes = [2, 64], strides = [1, 1]} : vector<2x192xf32> to vector<2x64xf32>
    %162 = vector.extract_strided_slice %160 {offsets = [0, 64], sizes = [2, 64], strides = [1, 1]} : vector<2x192xf32> to vector<2x64xf32>
    %163 = vector.extract_strided_slice %160 {offsets = [0, 128], sizes = [2, 64], strides = [1, 1]} : vector<2x192xf32> to vector<2x64xf32>
    %164 = vector.extract_strided_slice %152 {offsets = [0, 192], sizes = [2, 64], strides = [1, 1]} : vector<2x256xf32> to vector<2x64xf32>
    %165 = math.tanh %164 : vector<2x64xf32>
    %166 = arith.mulf %162, %139 : vector<2x64xf32>
    %167 = arith.mulf %161, %165 : vector<2x64xf32>
    %168 = arith.addf %166, %167 : vector<2x64xf32>
    %169 = math.tanh %168 : vector<2x64xf32>
    %170 = arith.mulf %163, %169 : vector<2x64xf32>
    %171 = arith.index_cast %c5_i32 : i32 to index
    %c0_57 = arith.constant 0 : index
    %c0_58 = arith.constant 0 : index
    %172 = vector.load %arg6[%171, %c0_57, %c0_58] : memref<8x2x64xf32, #tpu.memory_space<vmem>>, vector<1x2x64xf32>
    %173 = vector.shape_cast %172 : vector<1x2x64xf32> to vector<2x64xf32>
    %174 = vector.shape_cast %170 : vector<2x64xf32> to vector<1x2x64xf32>
    tpu.vector_store %arg6[%171, %c0_57, %c0_58], %174 {strides = array<i32>} : memref<8x2x64xf32, #tpu.memory_space<vmem>>, vector<1x2x64xf32>,
    %c6_i32 = arith.constant 6 : i32
    %175 = arith.index_cast %c6_i32 : i32 to index
    %c0_59 = arith.constant 0 : index
    %c0_60 = arith.constant 0 : index
    %176 = vector.load %arg0[%175, %c0_59, %c0_60] : memref<8x2x256xf32, #tpu.memory_space<vmem>>, vector<1x2x256xf32>
    %177 = vector.shape_cast %176 : vector<1x2x256xf32> to vector<2x256xf32>
    %178 = arith.truncf %170 : vector<2x64xf32> to vector<2x64xbf16>
    %c0_61 = arith.constant 0 : index
    %c0_62 = arith.constant 0 : index
    %179 = vector.load %arg1[%c0_61, %c0_62] : memref<64x256xbf16, #tpu.memory_space<vmem>>, vector<64x256xbf16>
    %cst_63 = arith.constant dense<0.000000e+00> : vector<2x256xf32>
    %180 = tpu.matmul %178, %179, %cst_63 {dimension_numbers = #tpu.dot_dimension_numbers<[1], [0], [0], [1], [0, 0, 1, 1], [], []>} : vector<2x64xbf16>, vector<64x256xbf16>, vector<2x256xf32> -> vector<2x256xf32>
    %181 = arith.addf %177, %180 : vector<2x256xf32>
    %182 = vector.extract_strided_slice %181 {offsets = [0, 0], sizes = [2, 192], strides = [1, 1]} : vector<2x256xf32> to vector<2x192xf32>
    %cst_64 = arith.constant 5.000000e-01 : f32
    %183 = vector.broadcast %cst_64 : f32 to vector<2x192xf32>
    %184 = arith.mulf %183, %182 : vector<2x192xf32>
    %185 = math.tanh %184 : vector<2x192xf32>
    %cst_65 = arith.constant 5.000000e-01 : f32
    %186 = vector.broadcast %cst_65 : f32 to vector<2x192xf32>
    %187 = arith.mulf %186, %185 : vector<2x192xf32>
    %cst_66 = arith.constant 5.000000e-01 : f32
    %188 = vector.broadcast %cst_66 : f32 to vector<2x192xf32>
    %189 = arith.addf %187, %188 : vector<2x192xf32>
    %190 = vector.extract_strided_slice %189 {offsets = [0, 0], sizes = [2, 64], strides = [1, 1]} : vector<2x192xf32> to vector<2x64xf32>
    %191 = vector.extract_strided_slice %189 {offsets = [0, 64], sizes = [2, 64], strides = [1, 1]} : vector<2x192xf32> to vector<2x64xf32>
    %192 = vector.extract_strided_slice %189 {offsets = [0, 128], sizes = [2, 64], strides = [1, 1]} : vector<2x192xf32> to vector<2x64xf32>
    %193 = vector.extract_strided_slice %181 {offsets = [0, 192], sizes = [2, 64], strides = [1, 1]} : vector<2x256xf32> to vector<2x64xf32>
    %194 = math.tanh %193 : vector<2x64xf32>
    %195 = arith.mulf %191, %168 : vector<2x64xf32>
    %196 = arith.mulf %190, %194 : vector<2x64xf32>
    %197 = arith.addf %195, %196 : vector<2x64xf32>
    %198 = math.tanh %197 : vector<2x64xf32>
    %199 = arith.mulf %192, %198 : vector<2x64xf32>
    %200 = arith.index_cast %c6_i32 : i32 to index
    %c0_67 = arith.constant 0 : index
    %c0_68 = arith.constant 0 : index
    %201 = vector.load %arg6[%200, %c0_67, %c0_68] : memref<8x2x64xf32, #tpu.memory_space<vmem>>, vector<1x2x64xf32>
    %202 = vector.shape_cast %201 : vector<1x2x64xf32> to vector<2x64xf32>
    %203 = vector.shape_cast %199 : vector<2x64xf32> to vector<1x2x64xf32>
    tpu.vector_store %arg6[%200, %c0_67, %c0_68], %203 {strides = array<i32>} : memref<8x2x64xf32, #tpu.memory_space<vmem>>, vector<1x2x64xf32>,
    %c7_i32 = arith.constant 7 : i32
    %204 = arith.index_cast %c7_i32 : i32 to index
    %c0_69 = arith.constant 0 : index
    %c0_70 = arith.constant 0 : index
    %205 = vector.load %arg0[%204, %c0_69, %c0_70] : memref<8x2x256xf32, #tpu.memory_space<vmem>>, vector<1x2x256xf32>
    %206 = vector.shape_cast %205 : vector<1x2x256xf32> to vector<2x256xf32>
    %207 = arith.truncf %199 : vector<2x64xf32> to vector<2x64xbf16>
    %c0_71 = arith.constant 0 : index
    %c0_72 = arith.constant 0 : index
    %208 = vector.load %arg1[%c0_71, %c0_72] : memref<64x256xbf16, #tpu.memory_space<vmem>>, vector<64x256xbf16>
    %cst_73 = arith.constant dense<0.000000e+00> : vector<2x256xf32>
    %209 = tpu.matmul %207, %208, %cst_73 {dimension_numbers = #tpu.dot_dimension_numbers<[1], [0], [0], [1], [0, 0, 1, 1], [], []>} : vector<2x64xbf16>, vector<64x256xbf16>, vector<2x256xf32> -> vector<2x256xf32>
    %210 = arith.addf %206, %209 : vector<2x256xf32>
    %211 = vector.extract_strided_slice %210 {offsets = [0, 0], sizes = [2, 192], strides = [1, 1]} : vector<2x256xf32> to vector<2x192xf32>
    %cst_74 = arith.constant 5.000000e-01 : f32
    %212 = vector.broadcast %cst_74 : f32 to vector<2x192xf32>
    %213 = arith.mulf %212, %211 : vector<2x192xf32>
    %214 = math.tanh %213 : vector<2x192xf32>
    %cst_75 = arith.constant 5.000000e-01 : f32
    %215 = vector.broadcast %cst_75 : f32 to vector<2x192xf32>
    %216 = arith.mulf %215, %214 : vector<2x192xf32>
    %cst_76 = arith.constant 5.000000e-01 : f32
    %217 = vector.broadcast %cst_76 : f32 to vector<2x192xf32>
    %218 = arith.addf %216, %217 : vector<2x192xf32>
    %219 = vector.extract_strided_slice %218 {offsets = [0, 0], sizes = [2, 64], strides = [1, 1]} : vector<2x192xf32> to vector<2x64xf32>
    %220 = vector.extract_strided_slice %218 {offsets = [0, 64], sizes = [2, 64], strides = [1, 1]} : vector<2x192xf32> to vector<2x64xf32>
    %221 = vector.extract_strided_slice %218 {offsets = [0, 128], sizes = [2, 64], strides = [1, 1]} : vector<2x192xf32> to vector<2x64xf32>
    %222 = vector.extract_strided_slice %210 {offsets = [0, 192], sizes = [2, 64], strides = [1, 1]} : vector<2x256xf32> to vector<2x64xf32>
    %223 = math.tanh %222 : vector<2x64xf32>
    %224 = arith.mulf %220, %197 : vector<2x64xf32>
    %225 = arith.mulf %219, %223 : vector<2x64xf32>
    %226 = arith.addf %224, %225 : vector<2x64xf32>
    %227 = math.tanh %226 : vector<2x64xf32>
    %228 = arith.mulf %221, %227 : vector<2x64xf32>
    %229 = arith.index_cast %c7_i32 : i32 to index
    %c0_77 = arith.constant 0 : index
    %c0_78 = arith.constant 0 : index
    %230 = vector.load %arg6[%229, %c0_77, %c0_78] : memref<8x2x64xf32, #tpu.memory_space<vmem>>, vector<1x2x64xf32>
    %231 = vector.shape_cast %230 : vector<1x2x64xf32> to vector<2x64xf32>
    %232 = vector.shape_cast %228 : vector<2x64xf32> to vector<1x2x64xf32>
    tpu.vector_store %arg6[%229, %c0_77, %c0_78], %232 {strides = array<i32>} : memref<8x2x64xf32, #tpu.memory_space<vmem>>, vector<1x2x64xf32>,
    %c8_i32 = arith.constant 8 : i32
    %c0_79 = arith.constant 0 : index
    %c0_80 = arith.constant 0 : index
    %c0_81 = arith.constant 0 : index
    %233 = vector.load %arg6[%c0_79, %c0_80, %c0_81] : memref<8x2x64xf32, #tpu.memory_space<vmem>>, vector<8x2x64xf32>
    %c0_82 = arith.constant 0 : index
    %c0_83 = arith.constant 0 : index
    %c0_84 = arith.constant 0 : index
    %234 = vector.load %arg2[%c0_82, %c0_83, %c0_84] : memref<8x2x64xf32, #tpu.memory_space<vmem>>, vector<8x2x64xf32>
    %235 = arith.mulf %233, %234 : vector<8x2x64xf32>
    %cst_85 = arith.constant dense<0.000000e+00> : vector<2x64xf32>
    %236 = vector.multi_reduction <add>, %235, %cst_85 [0] : vector<8x2x64xf32> to vector<2x64xf32>
    %cst_86 = arith.constant 1.250000e-01 : f32
    %237 = vector.broadcast %cst_86 : f32 to vector<2x64xf32>
    %238 = arith.mulf %236, %237 : vector<2x64xf32>
    %c7 = arith.constant 7 : index
    %c0_87 = arith.constant 0 : index
    %c0_88 = arith.constant 0 : index
    %239 = vector.load %arg6[%c7, %c0_87, %c0_88] : memref<8x2x64xf32, #tpu.memory_space<vmem>>, vector<1x2x64xf32>
    %240 = vector.shape_cast %239 : vector<1x2x64xf32> to vector<2x64xf32>
    %241 = vector.extract_strided_slice %240 {offsets = [0, 0], sizes = [2, 32], strides = [1, 1]} : vector<2x64xf32> to vector<2x32xf32>
    %c0_89 = arith.constant 0 : index
    %c0_90 = arith.constant 0 : index
    %c0_91 = arith.constant 0 : index
    %242 = vector.load %arg6[%c0_89, %c0_90, %c0_91] : memref<8x2x64xf32, #tpu.memory_space<vmem>>, vector<1x2x64xf32>
    %243 = vector.shape_cast %242 : vector<1x2x64xf32> to vector<2x64xf32>
    %244 = vector.extract_strided_slice %243 {offsets = [0, 32], sizes = [2, 32], strides = [1, 1]} : vector<2x64xf32> to vector<2x32xf32>
    %245 = tpu.concatenate %241, %244 in 1 : vector<2x32xf32>, vector<2x32xf32> -> vector<2x64xf32>
    %246 = tpu.concatenate %238, %245 in 1 : vector<2x64xf32>, vector<2x64xf32> -> vector<2x128xf32>
    %247 = arith.truncf %246 : vector<2x128xf32> to vector<2x128xbf16>
    %c0_92 = arith.constant 0 : index
    %c0_93 = arith.constant 0 : index
    %248 = vector.load %arg3[%c0_92, %c0_93] : memref<128x4xbf16, #tpu.memory_space<vmem>>, vector<128x4xbf16>
    %cst_94 = arith.constant dense<0.000000e+00> : vector<2x4xf32>
    %249 = tpu.matmul %247, %248, %cst_94 {dimension_numbers = #tpu.dot_dimension_numbers<[1], [0], [0], [1], [0, 0, 1, 1], [], []>} : vector<2x128xbf16>, vector<128x4xbf16>, vector<2x4xf32> -> vector<2x4xf32>
    %c0_95 = arith.constant 0 : index
    %c0_96 = arith.constant 0 : index
    %250 = vector.load %arg4[%c0_95, %c0_96] : memref<1x4xf32, #tpu.memory_space<vmem>>, vector<1x4xf32>
    %251 = vector.broadcast %250 : vector<1x4xf32> to vector<2x4xf32>
    %252 = arith.addf %249, %251 : vector<2x4xf32>
    %cst_97 = arith.constant dense<0xFF800000> : vector<2xf32>
    %253 = vector.multi_reduction <maximumf>, %252, %cst_97 [1] : vector<2x4xf32> to vector<2xf32>
    %254 = vector.shape_cast %253 : vector<2xf32> to vector<2x1xf32>
    %255 = vector.broadcast %254 : vector<2x1xf32> to vector<2x4xf32>
    %256 = arith.subf %252, %255 : vector<2x4xf32>
    %257 = math.exp %256 : vector<2x4xf32>
    %cst_98 = arith.constant dense<0.000000e+00> : vector<2xf32>
    %258 = vector.multi_reduction <add>, %257, %cst_98 [1] : vector<2x4xf32> to vector<2xf32>
    %259 = vector.shape_cast %258 : vector<2xf32> to vector<2x1xf32>
    %260 = math.log %259 : vector<2x1xf32>
    %261 = arith.addf %254, %260 : vector<2x1xf32>
    %262 = vector.broadcast %261 : vector<2x1xf32> to vector<2x4xf32>
    %263 = arith.subf %252, %262 : vector<2x4xf32>
    %c0_99 = arith.constant 0 : index
    %c0_100 = arith.constant 0 : index
    %264 = vector.load %arg5[%c0_99, %c0_100] : memref<2x4xf32, #tpu.memory_space<vmem>>, vector<2x4xf32>
    tpu.vector_store %arg5[%c0_99, %c0_100], %263 {strides = array<i32>} : memref<2x4xf32, #tpu.memory_space<vmem>>, vector<2x4xf32>,
    return
  }
}

</mosaic_0001>

<llo_original>
// kernel: bilstm_decoder_forward.1
$region0: #{bilstm_decoder_forward.1}
  #allocation0 [shape = 'u32[]', space=smem, size = 0x4, offset = 0x4, fixed_abs, tag = 'smem constant byte address 0x4 - core index']
  #allocation1 [shape = 'u32[72,128]{1,0:T(1,128)}', space=vmem, size = 0x9000, scoped, tag = 'internal scratch']
  #allocation2 [shape = 'f32[8,2,64]{2,1,0:T(2,128)}', space=vmem, size = 0x2000, scoped, tag = 'scratch operand']
  %s0 = inlined_call_operand.vmem [shape: f32[8,2,256], index: 0, kind: input, shape index: {}]
  %s1 = inlined_call_operand.vmem [shape: bf16[64,256], index: 1, kind: input, shape index: {}]
  %s2 = inlined_call_operand.vmem [shape: f32[8,2,64], index: 2, kind: input, shape index: {}]
  %s3 = inlined_call_operand.vmem [shape: bf16[128,4], index: 3, kind: input, shape index: {}]
  %s4 = inlined_call_operand.vmem [shape: f32[1,4], index: 4, kind: input, shape index: {}]
  %s5 = inlined_call_operand.hbm [shape: f32[2,4], index: 5, kind: output, shape index: {}]
  %s6 = sld [smem:[#allocation0]]
  $region30: #{bilstm_decoder_forward.1} parent=0
    _
  %s8 = ssub.s32 1, %s6
  %s9 = scalar_select 0, %s8, %s6
  $region1: #{bilstm_decoder_forward.1} parent=0
    #allocation3 [shape = 'u8[1024]{0}', space=vmem, size = 0x400, scoped, tag = 'output window, operand 0, single buffered']
    #allocation4 [shape = 's32[1]{0}', space=sflag, size = 0x4, scoped, tag = 'scoped memory for bilstm_decoder_forward.1']
    %10 = vsyncpa [#allocation4], 0
    // Predicated region
    $region2: #{bilstm_decoder_forward.1} parent=1 // pred_check
      _
    $region3: #{bilstm_decoder_forward.1} parent=1 // pred_check_branch
      %12 = sbr.rel (0) target = $region5
    $region4: #{bilstm_decoder_forward.1} parent=1 // pred_region
      _
    $region5: #{bilstm_decoder_forward.1} parent=1 // pred_fallthru
      _
    // Predicated region
    $region6: #{bilstm_decoder_forward.1} parent=1 // pred_check
      _
    $region7: #{bilstm_decoder_forward.1} parent=1 // pred_check_branch
      %14 = sbr.rel (0) target = $region9
    $region8: #{bilstm_decoder_forward.1} parent=1 // pred_region
      _
    $region9: #{bilstm_decoder_forward.1} parent=1 // pred_fallthru
      _
    // Predicated region
    $region10: #{bilstm_decoder_forward.1} parent=1 // pred_check
      _
    $region11: #{bilstm_decoder_forward.1} parent=1 // pred_check_branch
      %16 = sbr.rel (0) target = $region13
    $region12: #{bilstm_decoder_forward.1} parent=1 // pred_region
      _
    $region13: #{bilstm_decoder_forward.1} parent=1 // pred_fallthru
      _
    // Predicated region
    $region14: #{bilstm_decoder_forward.1} parent=1 // pred_check
      _
    $region15: #{bilstm_decoder_forward.1} parent=1 // pred_check_branch
      %18 = sbr.rel (0) target = $region17
    $region16: #{bilstm_decoder_forward.1} parent=1 // pred_region
      _
    $region17: #{bilstm_decoder_forward.1} parent=1 // pred_fallthru
      _
    // Predicated region
    $region18: #{bilstm_decoder_forward.1} parent=1 // pred_check
      _
    $region19: #{bilstm_decoder_forward.1} parent=1 // pred_check_branch
      %20 = sbr.rel (0) target = $region21
    $region20: #{bilstm_decoder_forward.1} parent=1 // pred_region
      _
    $region21: #{bilstm_decoder_forward.1} parent=1 // pred_fallthru
      _
    %v22 = vld [vmem:[%s0] sm:$0xf]
    %v23 = vld [vmem:[%s1] sm:$0xff]
    %v24 = vld [vmem:[%s1 + $0x8] sm:$0xff]
    %v25 = vld [vmem:[%s1 + $0x10] sm:$0xff]
    %v26 = vld [vmem:[%s1 + $0x18] sm:$0xff]
    %v27 = vld [vmem:[%s1 + $0x20] sm:$0xff]
    %v28 = vld [vmem:[%s1 + $0x28] sm:$0xff]
    %v29 = vld [vmem:[%s1 + $0x30] sm:$0xff]
    %v30 = vld [vmem:[%s1 + $0x38] sm:$0xff]
    %v39 = vunpack.c.l.b16 %v23
    %v40 = vunpack.c.h.b16 %v23
    %v41 = vunpack.c.l.b16 %v24
    %v42 = vunpack.c.h.b16 %v24
    %v43 = vunpack.c.l.b16 %v25
    %v44 = vunpack.c.h.b16 %v25
    %v45 = vunpack.c.l.b16 %v26
    %v46 = vunpack.c.h.b16 %v26
    %v47 = vunpack.c.l.b16 %v27
    %v48 = vunpack.c.h.b16 %v27
    %v49 = vunpack.c.l.b16 %v28
    %v50 = vunpack.c.h.b16 %v28
    %v51 = vunpack.c.l.b16 %v29
    %v52 = vunpack.c.h.b16 %v29
    %v53 = vunpack.c.l.b16 %v30
    %v54 = vunpack.c.h.b16 %v30
    %v55 = vpack.c.b16 %v41, %v39
    %v56 = vpack.c.b16 %v42, %v40
    %v57 = vpack.c.b16 %v45, %v43
    %v58 = vpack.c.b16 %v46, %v44
    %v59 = vpack.c.b16 %v49, %v47
    %v60 = vpack.c.b16 %v50, %v48
    %v61 = vpack.c.b16 %v53, %v51
    %v62 = vpack.c.b16 %v54, %v52
    %vm71 = vcmask 523264
    %v73 = vsel %vm71, 0, 0
    %75 = vmatpush.bf16.msra.mxu0 0
    %76 = vmatpush.bf16.msra.mxu0 0
    %77 = vmatpush.bf16.msra.mxu0 0
    %78 = vmatpush.bf16.msra.mxu0 0
    %79 = vmatpush.bf16.msra.mxu0 %v61
    %80 = vmatpush.bf16.msra.mxu0 %v59
    %81 = vmatpush.bf16.msra.mxu0 %v57
    %82 = vmatpush.bf16.msra.mxu0 %v55
    %83 = vmatmul.bf16.gmra.mxu0 %v73
    %v84 = vpop.f32.mrf.mxu0
    %v85 = vadd.f32 0.0, %v84
    %v86 = vpop.f32.mrf.mxu0
    %87 = vdwg.mxu0
    %88 = vmatpush.bf16.msra.mxu0 0
    %89 = vmatpush.bf16.msra.mxu0 0
    %90 = vmatpush.bf16.msra.mxu0 0
    %91 = vmatpush.bf16.msra.mxu0 0
    %92 = vmatpush.bf16.msra.mxu0 %v62
    %93 = vmatpush.bf16.msra.mxu0 %v60
    %94 = vmatpush.bf16.msra.mxu0 %v58
    %95 = vmatpush.bf16.msra.mxu0 %v56
    %96 = vmatmul.bf16.gmra.mxu0 %v73
    %v97 = vpop.f32.mrf.mxu0
    %v98 = vadd.f32 0.0, %v97
    %v99 = vpop.f32.mrf.mxu0
    %100 = vdwg.mxu0
    %v103 = vrot.slane %v98, 6
    %vm104 = vcmask 1041408
    %v105 = vsel %vm104, %v85, %v103
    %v107 = vadd.f32 %v22, %v105
    %v108 = vmul.f32 %v107, 0.5
    %v109 = vtanh.pop %v108
    %v110 = vmul.f32 %v109, 0.5
    %v111 = vadd.f32 %v110, 0.5
    %113 = vrot.lane.b32.xlu0 %v107, 64
    %v114 = vpop.permute.xlu0 %113
    %v115 = vrot.slane %v114, 2
    %v117 = vtanh.pop %v115
    %v118 = vmul.f32 %v111, 0.0
    %v119 = vmul.f32 %v111, %v117
    %121 = vrot.lane.b32.xlu0 %v119, 64
    %v122 = vpop.permute.xlu0 %121
    %v124 = vadd.f32 %v118, %v122
    %v125 = vtanh.pop %v124
    %v127 = vrot.slane %v111, 2
    %130 = vrot.lane.b32.xlu0 %v125, 64
    %v131 = vpop.permute.xlu0 %130
    %v133 = vmul.f32 %v127, %v131
    %vm134 = vcmask 517120
    %135 = vst.msk [vmem:[#allocation2] sm:$0x3] %vm134, %v133
    %s136 = scalar_lea.vmem %s0, 4
    %v137 = vld [vmem:[%s136] sm:$0xf]
    %v138 = vpack.c.bf16 %v133, %v133
    %v139 = vld [vmem:[%s1] sm:$0xff]
    %v140 = vld [vmem:[%s1 + $0x8] sm:$0xff]
    %v141 = vld [vmem:[%s1 + $0x10] sm:$0xff]
    %v142 = vld [vmem:[%s1 + $0x18] sm:$0xff]
    %v143 = vld [vmem:[%s1 + $0x20] sm:$0xff]
    %v144 = vld [vmem:[%s1 + $0x28] sm:$0xff]
    %v145 = vld [vmem:[%s1 + $0x30] sm:$0xff]
    %v146 = vld [vmem:[%s1 + $0x38] sm:$0xff]
    %v155 = vunpack.c.l.b16 %v139
    %v156 = vunpack.c.h.b16 %v139
    %v157 = vunpack.c.l.b16 %v140
    %v158 = vunpack.c.h.b16 %v140
    %v159 = vunpack.c.l.b16 %v141
    %v160 = vunpack.c.h.b16 %v141
    %v161 = vunpack.c.l.b16 %v142
    %v162 = vunpack.c.h.b16 %v142
    %v163 = vunpack.c.l.b16 %v143
    %v164 = vunpack.c.h.b16 %v143
    %v165 = vunpack.c.l.b16 %v144
    %v166 = vunpack.c.h.b16 %v144
    %v167 = vunpack.c.l.b16 %v145
    %v168 = vunpack.c.h.b16 %v145
    %v169 = vunpack.c.l.b16 %v146
    %v170 = vunpack.c.h.b16 %v146
    %v171 = vpack.c.b16 %v157, %v155
    %v172 = vpack.c.b16 %v158, %v156
    %v173 = vpack.c.b16 %v161, %v159
    %v174 = vpack.c.b16 %v162, %v160
    %v175 = vpack.c.b16 %v165, %v163
    %v176 = vpack.c.b16 %v166, %v164
    %v177 = vpack.c.b16 %v169, %v167
    %v178 = vpack.c.b16 %v170, %v168
    %v188 = vsel %vm71, %v138, 0
    %190 = vmatpush.bf16.msra.mxu0 0
    %191 = vmatpush.bf16.msra.mxu0 0
    %192 = vmatpush.bf16.msra.mxu0 0
    %193 = vmatpush.bf16.msra.mxu0 0
    %194 = vmatpush.bf16.msra.mxu0 %v177
    %195 = vmatpush.bf16.msra.mxu0 %v175
    %196 = vmatpush.bf16.msra.mxu0 %v173
    %197 = vmatpush.bf16.msra.mxu0 %v171
    %198 = vmatmul.bf16.gmra.mxu0 %v188
    %v199 = vpop.f32.mrf.mxu0
    %v200 = vadd.f32 0.0, %v199
    %v201 = vpop.f32.mrf.mxu0
    %202 = vdwg.mxu0
    %203 = vmatpush.bf16.msra.mxu0 0
    %204 = vmatpush.bf16.msra.mxu0 0
    %205 = vmatpush.bf16.msra.mxu0 0
    %206 = vmatpush.bf16.msra.mxu0 0
    %207 = vmatpush.bf16.msra.mxu0 %v178
    %208 = vmatpush.bf16.msra.mxu0 %v176
    %209 = vmatpush.bf16.msra.mxu0 %v174
    %210 = vmatpush.bf16.msra.mxu0 %v172
    %211 = vmatmul.bf16.gmra.mxu0 %v188
    %v212 = vpop.f32.mrf.mxu0
    %v213 = vadd.f32 0.0, %v212
    %v214 = vpop.f32.mrf.mxu0
    %215 = vdwg.mxu0
    %v218 = vrot.slane %v213, 6
    %v219 = vsel %vm104, %v200, %v218
    %v221 = vadd.f32 %v137, %v219
    %v222 = vmul.f32 %v221, 0.5
    %v223 = vtanh.pop %v222
    %v224 = vmul.f32 %v223, 0.5
    %v225 = vadd.f32 %v224, 0.5
    %227 = vrot.lane.b32.xlu0 %v221, 64
    %v228 = vpop.permute.xlu0 %227
    %v229 = vrot.slane %v228, 2
    %v231 = vtanh.pop %v229
    %v232 = vmul.f32 %v225, %v124
    %v233 = vmul.f32 %v225, %v231
    %235 = vrot.lane.b32.xlu0 %v233, 64
    %v236 = vpop.permute.xlu0 %235
    %v238 = vadd.f32 %v232, %v236
    %v239 = vtanh.pop %v238
    %v241 = vrot.slane %v225, 2
    %244 = vrot.lane.b32.xlu0 %v239, 64
    %v245 = vpop.permute.xlu0 %244
    %v247 = vmul.f32 %v241, %v245
    %s248 = scalar_lea.vmem [#allocation2], 2
    %249 = vst.msk [vmem:[%s248] sm:$0x3] %vm134, %v247
    %s250 = scalar_lea.vmem %s0, 8
    %v251 = vld [vmem:[%s250] sm:$0xf]
    %v252 = vpack.c.bf16 %v247, %v247
    %v253 = vld [vmem:[%s1] sm:$0xff]
    %v254 = vld [vmem:[%s1 + $0x8] sm:$0xff]
    %v255 = vld [vmem:[%s1 + $0x10] sm:$0xff]
    %v256 = vld [vmem:[%s1 + $0x18] sm:$0xff]
    %v257 = vld [vmem:[%s1 + $0x20] sm:$0xff]
    %v258 = vld [vmem:[%s1 + $0x28] sm:$0xff]
    %v259 = vld [vmem:[%s1 + $0x30] sm:$0xff]
    %v260 = vld [vmem:[%s1 + $0x38] sm:$0xff]
    %v269 = vunpack.c.l.b16 %v253
    %v270 = vunpack.c.h.b16 %v253
    %v271 = vunpack.c.l.b16 %v254
    %v272 = vunpack.c.h.b16 %v254
    %v273 = vunpack.c.l.b16 %v255
    %v274 = vunpack.c.h.b16 %v255
    %v275 = vunpack.c.l.b16 %v256
    %v276 = vunpack.c.h.b16 %v256
    %v277 = vunpack.c.l.b16 %v257
    %v278 = vunpack.c.h.b16 %v257
    %v279 = vunpack.c.l.b16 %v258
    %v280 = vunpack.c.h.b16 %v258
    %v281 = vunpack.c.l.b16 %v259
    %v282 = vunpack.c.h.b16 %v259
    %v283 = vunpack.c.l.b16 %v260
    %v284 = vunpack.c.h.b16 %v260
    %v285 = vpack.c.b16 %v271, %v269
    %v286 = vpack.c.b16 %v272, %v270
    %v287 = vpack.c.b16 %v275, %v273
    %v288 = vpack.c.b16 %v276, %v274
    %v289 = vpack.c.b16 %v279, %v277
    %v290 = vpack.c.b16 %v280, %v278
    %v291 = vpack.c.b16 %v283, %v281
    %v292 = vpack.c.b16 %v284, %v282
    %v302 = vsel %vm71, %v252, 0
    %304 = vmatpush.bf16.msra.mxu0 0
    %305 = vmatpush.bf16.msra.mxu0 0
    %306 = vmatpush.bf16.msra.mxu0 0
    %307 = vmatpush.bf16.msra.mxu0 0
    %308 = vmatpush.bf16.msra.mxu0 %v291
    %309 = vmatpush.bf16.msra.mxu0 %v289
    %310 = vmatpush.bf16.msra.mxu0 %v287
    %311 = vmatpush.bf16.msra.mxu0 %v285
    %312 = vmatmul.bf16.gmra.mxu0 %v302
    %v313 = vpop.f32.mrf.mxu0
    %v314 = vadd.f32 0.0, %v313
    %v315 = vpop.f32.mrf.mxu0
    %316 = vdwg.mxu0
    %317 = vmatpush.bf16.msra.mxu0 0
    %318 = vmatpush.bf16.msra.mxu0 0
    %319 = vmatpush.bf16.msra.mxu0 0
    %320 = vmatpush.bf16.msra.mxu0 0
    %321 = vmatpush.bf16.msra.mxu0 %v292
    %322 = vmatpush.bf16.msra.mxu0 %v290
    %323 = vmatpush.bf16.msra.mxu0 %v288
    %324 = vmatpush.bf16.msra.mxu0 %v286
    %325 = vmatmul.bf16.gmra.mxu0 %v302
    %v326 = vpop.f32.mrf.mxu0
    %v327 = vadd.f32 0.0, %v326
    %v328 = vpop.f32.mrf.mxu0
    %329 = vdwg.mxu0
    %v332 = vrot.slane %v327, 6
    %v333 = vsel %vm104, %v314, %v332
    %v335 = vadd.f32 %v251, %v333
    %v336 = vmul.f32 %v335, 0.5
    %v337 = vtanh.pop %v336
    %v338 = vmul.f32 %v337, 0.5
    %v339 = vadd.f32 %v338, 0.5
    %341 = vrot.lane.b32.xlu0 %v335, 64
    %v342 = vpop.permute.xlu0 %341
    %v343 = vrot.slane %v342, 2
    %v345 = vtanh.pop %v343
    %v346 = vmul.f32 %v339, %v238
    %v347 = vmul.f32 %v339, %v345
    %349 = vrot.lane.b32.xlu0 %v347, 64
    %v350 = vpop.permute.xlu0 %349
    %v352 = vadd.f32 %v346, %v350
    %v353 = vtanh.pop %v352
    %v355 = vrot.slane %v339, 2
    %358 = vrot.lane.b32.xlu0 %v353, 64
    %v359 = vpop.permute.xlu0 %358
    %v361 = vmul.f32 %v355, %v359
    %s362 = scalar_lea.vmem [#allocation2], 4
    %363 = vst.msk [vmem:[%s362] sm:$0x3] %vm134, %v361
    %s364 = scalar_lea.vmem %s0, 12
    %v365 = vld [vmem:[%s364] sm:$0xf]
    %v366 = vpack.c.bf16 %v361, %v361
    %v367 = vld [vmem:[%s1] sm:$0xff]
    %v368 = vld [vmem:[%s1 + $0x8] sm:$0xff]
    %v369 = vld [vmem:[%s1 + $0x10] sm:$0xff]
    %v370 = vld [vmem:[%s1 + $0x18] sm:$0xff]
    %v371 = vld [vmem:[%s1 + $0x20] sm:$0xff]
    %v372 = vld [vmem:[%s1 + $0x28] sm:$0xff]
    %v373 = vld [vmem:[%s1 + $0x30] sm:$0xff]
    %v374 = vld [vmem:[%s1 + $0x38] sm:$0xff]
    %v383 = vunpack.c.l.b16 %v367
    %v384 = vunpack.c.h.b16 %v367
    %v385 = vunpack.c.l.b16 %v368
    %v386 = vunpack.c.h.b16 %v368
    %v387 = vunpack.c.l.b16 %v369
    %v388 = vunpack.c.h.b16 %v369
    %v389 = vunpack.c.l.b16 %v370
    %v390 = vunpack.c.h.b16 %v370
    %v391 = vunpack.c.l.b16 %v371
    %v392 = vunpack.c.h.b16 %v371
    %v393 = vunpack.c.l.b16 %v372
    %v394 = vunpack.c.h.b16 %v372
    %v395 = vunpack.c.l.b16 %v373
    %v396 = vunpack.c.h.b16 %v373
    %v397 = vunpack.c.l.b16 %v374
    %v398 = vunpack.c.h.b16 %v374
    %v399 = vpack.c.b16 %v385, %v383
    %v400 = vpack.c.b16 %v386, %v384
    %v401 = vpack.c.b16 %v389, %v387
    %v402 = vpack.c.b16 %v390, %v388
    %v403 = vpack.c.b16 %v393, %v391
    %v404 = vpack.c.b16 %v394, %v392
    %v405 = vpack.c.b16 %v397, %v395
    %v406 = vpack.c.b16 %v398, %v396
    %v416 = vsel %vm71, %v366, 0
    %418 = vmatpush.bf16.msra.mxu0 0
    %419 = vmatpush.bf16.msra.mxu0 0
    %420 = vmatpush.bf16.msra.mxu0 0
    %421 = vmatpush.bf16.msra.mxu0 0
    %422 = vmatpush.bf16.msra.mxu0 %v405
    %423 = vmatpush.bf16.msra.mxu0 %v403
    %424 = vmatpush.bf16.msra.mxu0 %v401
    %425 = vmatpush.bf16.msra.mxu0 %v399
    %426 = vmatmul.bf16.gmra.mxu0 %v416
    %v427 = vpop.f32.mrf.mxu0
    %v428 = vadd.f32 0.0, %v427
    %v429 = vpop.f32.mrf.mxu0
    %430 = vdwg.mxu0
    %431 = vmatpush.bf16.msra.mxu0 0
    %432 = vmatpush.bf16.msra.mxu0 0
    %433 = vmatpush.bf16.msra.mxu0 0
    %434 = vmatpush.bf16.msra.mxu0 0
    %435 = vmatpush.bf16.msra.mxu0 %v406
    %436 = vmatpush.bf16.msra.mxu0 %v404
    %437 = vmatpush.bf16.msra.mxu0 %v402
    %438 = vmatpush.bf16.msra.mxu0 %v400
    %439 = vmatmul.bf16.gmra.mxu0 %v416
    %v440 = vpop.f32.mrf.mxu0
    %v441 = vadd.f32 0.0, %v440
    %v442 = vpop.f32.mrf.mxu0
    %443 = vdwg.mxu0
    %v446 = vrot.slane %v441, 6
    %v447 = vsel %vm104, %v428, %v446
    %v449 = vadd.f32 %v365, %v447
    %v450 = vmul.f32 %v449, 0.5
    %v451 = vtanh.pop %v450
    %v452 = vmul.f32 %v451, 0.5
    %v453 = vadd.f32 %v452, 0.5
    %455 = vrot.lane.b32.xlu0 %v449, 64
    %v456 = vpop.permute.xlu0 %455
    %v457 = vrot.slane %v456, 2
    %v459 = vtanh.pop %v457
    %v460 = vmul.f32 %v453, %v352
    %v461 = vmul.f32 %v453, %v459
    %463 = vrot.lane.b32.xlu0 %v461, 64
    %v464 = vpop.permute.xlu0 %463
    %v466 = vadd.f32 %v460, %v464
    %v467 = vtanh.pop %v466
    %v469 = vrot.slane %v453, 2
    %472 = vrot.lane.b32.xlu0 %v467, 64
    %v473 = vpop.permute.xlu0 %472
    %v475 = vmul.f32 %v469, %v473
    %s476 = scalar_lea.vmem [#allocation2], 6
    %477 = vst.msk [vmem:[%s476] sm:$0x3] %vm134, %v475
    %s478 = scalar_lea.vmem %s0, 16
    %v479 = vld [vmem:[%s478] sm:$0xf]
    %v480 = vpack.c.bf16 %v475, %v475
    %v481 = vld [vmem:[%s1] sm:$0xff]
    %v482 = vld [vmem:[%s1 + $0x8] sm:$0xff]
    %v483 = vld [vmem:[%s1 + $0x10] sm:$0xff]
    %v484 = vld [vmem:[%s1 + $0x18] sm:$0xff]
    %v485 = vld [vmem:[%s1 + $0x20] sm:$0xff]
    %v486 = vld [vmem:[%s1 + $0x28] sm:$0xff]
    %v487 = vld [vmem:[%s1 + $0x30] sm:$0xff]
    %v488 = vld [vmem:[%s1 + $0x38] sm:$0xff]
    %v497 = vunpack.c.l.b16 %v481
    %v498 = vunpack.c.h.b16 %v481
    %v499 = vunpack.c.l.b16 %v482
    %v500 = vunpack.c.h.b16 %v482
    %v501 = vunpack.c.l.b16 %v483
    %v502 = vunpack.c.h.b16 %v483
    %v503 = vunpack.c.l.b16 %v484
    %v504 = vunpack.c.h.b16 %v484
    %v505 = vunpack.c.l.b16 %v485
    %v506 = vunpack.c.h.b16 %v485
    %v507 = vunpack.c.l.b16 %v486
    %v508 = vunpack.c.h.b16 %v486
    %v509 = vunpack.c.l.b16 %v487
    %v510 = vunpack.c.h.b16 %v487
    %v511 = vunpack.c.l.b16 %v488
    %v512 = vunpack.c.h.b16 %v488
    %v513 = vpack.c.b16 %v499, %v497
    %v514 = vpack.c.b16 %v500, %v498
    %v515 = vpack.c.b16 %v503, %v501
    %v516 = vpack.c.b16 %v504, %v502
    %v517 = vpack.c.b16 %v507, %v505
    %v518 = vpack.c.b16 %v508, %v506
    %v519 = vpack.c.b16 %v511, %v509
    %v520 = vpack.c.b16 %v512, %v510
    %v530 = vsel %vm71, %v480, 0
    %532 = vmatpush.bf16.msra.mxu0 0
    %533 = vmatpush.bf16.msra.mxu0 0
    %534 = vmatpush.bf16.msra.mxu0 0
    %535 = vmatpush.bf16.msra.mxu0 0
    %536 = vmatpush.bf16.msra.mxu0 %v519
    %537 = vmatpush.bf16.msra.mxu0 %v517
    %538 = vmatpush.bf16.msra.mxu0 %v515
    %539 = vmatpush.bf16.msra.mxu0 %v513
    %540 = vmatmul.bf16.gmra.mxu0 %v530
    %v541 = vpop.f32.mrf.mxu0
    %v542 = vadd.f32 0.0, %v541
    %v543 = vpop.f32.mrf.mxu0
    %544 = vdwg.mxu0
    %545 = vmatpush.bf16.msra.mxu0 0
    %546 = vmatpush.bf16.msra.mxu0 0
    %547 = vmatpush.bf16.msra.mxu0 0
    %548 = vmatpush.bf16.msra.mxu0 0
    %549 = vmatpush.bf16.msra.mxu0 %v520
    %550 = vmatpush.bf16.msra.mxu0 %v518
    %551 = vmatpush.bf16.msra.mxu0 %v516
    %552 = vmatpush.bf16.msra.mxu0 %v514
    %553 = vmatmul.bf16.gmra.mxu0 %v530
    %v554 = vpop.f32.mrf.mxu0
    %v555 = vadd.f32 0.0, %v554
    %v556 = vpop.f32.mrf.mxu0
    %557 = vdwg.mxu0
    %v560 = vrot.slane %v555, 6
    %v561 = vsel %vm104, %v542, %v560
    %v563 = vadd.f32 %v479, %v561
    %v564 = vmul.f32 %v563, 0.5
    %v565 = vtanh.pop %v564
    %v566 = vmul.f32 %v565, 0.5
    %v567 = vadd.f32 %v566, 0.5
    %569 = vrot.lane.b32.xlu0 %v563, 64
    %v570 = vpop.permute.xlu0 %569
    %v571 = vrot.slane %v570, 2
    %v573 = vtanh.pop %v571
    %v574 = vmul.f32 %v567, %v466
    %v575 = vmul.f32 %v567, %v573
    %577 = vrot.lane.b32.xlu0 %v575, 64
    %v578 = vpop.permute.xlu0 %577
    %v580 = vadd.f32 %v574, %v578
    %v581 = vtanh.pop %v580
    %v583 = vrot.slane %v567, 2
    %586 = vrot.lane.b32.xlu0 %v581, 64
    %v587 = vpop.permute.xlu0 %586
    %v589 = vmul.f32 %v583, %v587
    %s590 = scalar_lea.vmem [#allocation2], 8
    %591 = vst.msk [vmem:[%s590] sm:$0x3] %vm134, %v589
    %s592 = scalar_lea.vmem %s0, 20
    %v593 = vld [vmem:[%s592] sm:$0xf]
    %v594 = vpack.c.bf16 %v589, %v589
    %v595 = vld [vmem:[%s1] sm:$0xff]
    %v596 = vld [vmem:[%s1 + $0x8] sm:$0xff]
    %v597 = vld [vmem:[%s1 + $0x10] sm:$0xff]
    %v598 = vld [vmem:[%s1 + $0x18] sm:$0xff]
    %v599 = vld [vmem:[%s1 + $0x20] sm:$0xff]
    %v600 = vld [vmem:[%s1 + $0x28] sm:$0xff]
    %v601 = vld [vmem:[%s1 + $0x30] sm:$0xff]
    %v602 = vld [vmem:[%s1 + $0x38] sm:$0xff]
    %v611 = vunpack.c.l.b16 %v595
    %v612 = vunpack.c.h.b16 %v595
    %v613 = vunpack.c.l.b16 %v596
    %v614 = vunpack.c.h.b16 %v596
    %v615 = vunpack.c.l.b16 %v597
    %v616 = vunpack.c.h.b16 %v597
    %v617 = vunpack.c.l.b16 %v598
    %v618 = vunpack.c.h.b16 %v598
    %v619 = vunpack.c.l.b16 %v599
    %v620 = vunpack.c.h.b16 %v599
    %v621 = vunpack.c.l.b16 %v600
    %v622 = vunpack.c.h.b16 %v600
    %v623 = vunpack.c.l.b16 %v601
    %v624 = vunpack.c.h.b16 %v601
    %v625 = vunpack.c.l.b16 %v602
    %v626 = vunpack.c.h.b16 %v602
    %v627 = vpack.c.b16 %v613, %v611
    %v628 = vpack.c.b16 %v614, %v612
    %v629 = vpack.c.b16 %v617, %v615
    %v630 = vpack.c.b16 %v618, %v616
    %v631 = vpack.c.b16 %v621, %v619
    %v632 = vpack.c.b16 %v622, %v620
    %v633 = vpack.c.b16 %v625, %v623
    %v634 = vpack.c.b16 %v626, %v624
    %v644 = vsel %vm71, %v594, 0
    %646 = vmatpush.bf16.msra.mxu0 0
    %647 = vmatpush.bf16.msra.mxu0 0
    %648 = vmatpush.bf16.msra.mxu0 0
    %649 = vmatpush.bf16.msra.mxu0 0
    %650 = vmatpush.bf16.msra.mxu0 %v633
    %651 = vmatpush.bf16.msra.mxu0 %v631
    %652 = vmatpush.bf16.msra.mxu0 %v629
    %653 = vmatpush.bf16.msra.mxu0 %v627
    %654 = vmatmul.bf16.gmra.mxu0 %v644
    %v655 = vpop.f32.mrf.mxu0
    %v656 = vadd.f32 0.0, %v655
    %v657 = vpop.f32.mrf.mxu0
    %658 = vdwg.mxu0
    %659 = vmatpush.bf16.msra.mxu0 0
    %660 = vmatpush.bf16.msra.mxu0 0
    %661 = vmatpush.bf16.msra.mxu0 0
    %662 = vmatpush.bf16.msra.mxu0 0
    %663 = vmatpush.bf16.msra.mxu0 %v634
    %664 = vmatpush.bf16.msra.mxu0 %v632
    %665 = vmatpush.bf16.msra.mxu0 %v630
    %666 = vmatpush.bf16.msra.mxu0 %v628
    %667 = vmatmul.bf16.gmra.mxu0 %v644
    %v668 = vpop.f32.mrf.mxu0
    %v669 = vadd.f32 0.0, %v668
    %v670 = vpop.f32.mrf.mxu0
    %671 = vdwg.mxu0
    %v674 = vrot.slane %v669, 6
    %v675 = vsel %vm104, %v656, %v674
    %v677 = vadd.f32 %v593, %v675
    %v678 = vmul.f32 %v677, 0.5
    %v679 = vtanh.pop %v678
    %v680 = vmul.f32 %v679, 0.5
    %v681 = vadd.f32 %v680, 0.5
    %683 = vrot.lane.b32.xlu0 %v677, 64
    %v684 = vpop.permute.xlu0 %683
    %v685 = vrot.slane %v684, 2
    %v687 = vtanh.pop %v685
    %v688 = vmul.f32 %v681, %v580
    %v689 = vmul.f32 %v681, %v687
    %691 = vrot.lane.b32.xlu0 %v689, 64
    %v692 = vpop.permute.xlu0 %691
    %v694 = vadd.f32 %v688, %v692
    %v695 = vtanh.pop %v694
    %v697 = vrot.slane %v681, 2
    %700 = vrot.lane.b32.xlu0 %v695, 64
    %v701 = vpop.permute.xlu0 %700
    %v703 = vmul.f32 %v697, %v701
    %s704 = scalar_lea.vmem [#allocation2], 10
    %705 = vst.msk [vmem:[%s704] sm:$0x3] %vm134, %v703
    %s706 = scalar_lea.vmem %s0, 24
    %v707 = vld [vmem:[%s706] sm:$0xf]
    %v708 = vpack.c.bf16 %v703, %v703
    %v709 = vld [vmem:[%s1] sm:$0xff]
    %v710 = vld [vmem:[%s1 + $0x8] sm:$0xff]
    %v711 = vld [vmem:[%s1 + $0x10] sm:$0xff]
    %v712 = vld [vmem:[%s1 + $0x18] sm:$0xff]
    %v713 = vld [vmem:[%s1 + $0x20] sm:$0xff]
    %v714 = vld [vmem:[%s1 + $0x28] sm:$0xff]
    %v715 = vld [vmem:[%s1 + $0x30] sm:$0xff]
    %v716 = vld [vmem:[%s1 + $0x38] sm:$0xff]
    %v725 = vunpack.c.l.b16 %v709
    %v726 = vunpack.c.h.b16 %v709
    %v727 = vunpack.c.l.b16 %v710
    %v728 = vunpack.c.h.b16 %v710
    %v729 = vunpack.c.l.b16 %v711
    %v730 = vunpack.c.h.b16 %v711
    %v731 = vunpack.c.l.b16 %v712
    %v732 = vunpack.c.h.b16 %v712
    %v733 = vunpack.c.l.b16 %v713
    %v734 = vunpack.c.h.b16 %v713
    %v735 = vunpack.c.l.b16 %v714
    %v736 = vunpack.c.h.b16 %v714
    %v737 = vunpack.c.l.b16 %v715
    %v738 = vunpack.c.h.b16 %v715
    %v739 = vunpack.c.l.b16 %v716
    %v740 = vunpack.c.h.b16 %v716
    %v741 = vpack.c.b16 %v727, %v725
    %v742 = vpack.c.b16 %v728, %v726
    %v743 = vpack.c.b16 %v731, %v729
    %v744 = vpack.c.b16 %v732, %v730
    %v745 = vpack.c.b16 %v735, %v733
    %v746 = vpack.c.b16 %v736, %v734
    %v747 = vpack.c.b16 %v739, %v737
    %v748 = vpack.c.b16 %v740, %v738
    %v758 = vsel %vm71, %v708, 0
    %760 = vmatpush.bf16.msra.mxu0 0
    %761 = vmatpush.bf16.msra.mxu0 0
    %762 = vmatpush.bf16.msra.mxu0 0
    %763 = vmatpush.bf16.msra.mxu0 0
    %764 = vmatpush.bf16.msra.mxu0 %v747
    %765 = vmatpush.bf16.msra.mxu0 %v745
    %766 = vmatpush.bf16.msra.mxu0 %v743
    %767 = vmatpush.bf16.msra.mxu0 %v741
    %768 = vmatmul.bf16.gmra.mxu0 %v758
    %v769 = vpop.f32.mrf.mxu0
    %v770 = vadd.f32 0.0, %v769
    %v771 = vpop.f32.mrf.mxu0
    %772 = vdwg.mxu0
    %773 = vmatpush.bf16.msra.mxu0 0
    %774 = vmatpush.bf16.msra.mxu0 0
    %775 = vmatpush.bf16.msra.mxu0 0
    %776 = vmatpush.bf16.msra.mxu0 0
    %777 = vmatpush.bf16.msra.mxu0 %v748
    %778 = vmatpush.bf16.msra.mxu0 %v746
    %779 = vmatpush.bf16.msra.mxu0 %v744
    %780 = vmatpush.bf16.msra.mxu0 %v742
    %781 = vmatmul.bf16.gmra.mxu0 %v758
    %v782 = vpop.f32.mrf.mxu0
    %v783 = vadd.f32 0.0, %v782
    %v784 = vpop.f32.mrf.mxu0
    %785 = vdwg.mxu0
    %v788 = vrot.slane %v783, 6
    %v789 = vsel %vm104, %v770, %v788
    %v791 = vadd.f32 %v707, %v789
    %v792 = vmul.f32 %v791, 0.5
    %v793 = vtanh.pop %v792
    %v794 = vmul.f32 %v793, 0.5
    %v795 = vadd.f32 %v794, 0.5
    %797 = vrot.lane.b32.xlu0 %v791, 64
    %v798 = vpop.permute.xlu0 %797
    %v799 = vrot.slane %v798, 2
    %v801 = vtanh.pop %v799
    %v802 = vmul.f32 %v795, %v694
    %v803 = vmul.f32 %v795, %v801
    %805 = vrot.lane.b32.xlu0 %v803, 64
    %v806 = vpop.permute.xlu0 %805
    %v808 = vadd.f32 %v802, %v806
    %v809 = vtanh.pop %v808
    %v811 = vrot.slane %v795, 2
    %814 = vrot.lane.b32.xlu0 %v809, 64
    %v815 = vpop.permute.xlu0 %814
    %v817 = vmul.f32 %v811, %v815
    %s818 = scalar_lea.vmem [#allocation2], 12
    %819 = vst.msk [vmem:[%s818] sm:$0x3] %vm134, %v817
    %s820 = scalar_lea.vmem %s0, 28
    %v821 = vld [vmem:[%s820] sm:$0xf]
    %v822 = vpack.c.bf16 %v817, %v817
    %v823 = vld [vmem:[%s1] sm:$0xff]
    %v824 = vld [vmem:[%s1 + $0x8] sm:$0xff]
    %v825 = vld [vmem:[%s1 + $0x10] sm:$0xff]
    %v826 = vld [vmem:[%s1 + $0x18] sm:$0xff]
    %v827 = vld [vmem:[%s1 + $0x20] sm:$0xff]
    %v828 = vld [vmem:[%s1 + $0x28] sm:$0xff]
    %v829 = vld [vmem:[%s1 + $0x30] sm:$0xff]
    %v830 = vld [vmem:[%s1 + $0x38] sm:$0xff]
    %v839 = vunpack.c.l.b16 %v823
    %v840 = vunpack.c.h.b16 %v823
    %v841 = vunpack.c.l.b16 %v824
    %v842 = vunpack.c.h.b16 %v824
    %v843 = vunpack.c.l.b16 %v825
    %v844 = vunpack.c.h.b16 %v825
    %v845 = vunpack.c.l.b16 %v826
    %v846 = vunpack.c.h.b16 %v826
    %v847 = vunpack.c.l.b16 %v827
    %v848 = vunpack.c.h.b16 %v827
    %v849 = vunpack.c.l.b16 %v828
    %v850 = vunpack.c.h.b16 %v828
    %v851 = vunpack.c.l.b16 %v829
    %v852 = vunpack.c.h.b16 %v829
    %v853 = vunpack.c.l.b16 %v830
    %v854 = vunpack.c.h.b16 %v830
    %v855 = vpack.c.b16 %v841, %v839
    %v856 = vpack.c.b16 %v842, %v840
    %v857 = vpack.c.b16 %v845, %v843
    %v858 = vpack.c.b16 %v846, %v844
    %v859 = vpack.c.b16 %v849, %v847
    %v860 = vpack.c.b16 %v850, %v848
    %v861 = vpack.c.b16 %v853, %v851
    %v862 = vpack.c.b16 %v854, %v852
    %v872 = vsel %vm71, %v822, 0
    %874 = vmatpush.bf16.msra.mxu0 0
    %875 = vmatpush.bf16.msra.mxu0 0
    %876 = vmatpush.bf16.msra.mxu0 0
    %877 = vmatpush.bf16.msra.mxu0 0
    %878 = vmatpush.bf16.msra.mxu0 %v861
    %879 = vmatpush.bf16.msra.mxu0 %v859
    %880 = vmatpush.bf16.msra.mxu0 %v857
    %881 = vmatpush.bf16.msra.mxu0 %v855
    %882 = vmatmul.bf16.gmra.mxu0 %v872
    %v883 = vpop.f32.mrf.mxu0
    %v884 = vadd.f32 0.0, %v883
    %v885 = vpop.f32.mrf.mxu0
    %886 = vdwg.mxu0
    %887 = vmatpush.bf16.msra.mxu0 0
    %888 = vmatpush.bf16.msra.mxu0 0
    %889 = vmatpush.bf16.msra.mxu0 0
    %890 = vmatpush.bf16.msra.mxu0 0
    %891 = vmatpush.bf16.msra.mxu0 %v862
    %892 = vmatpush.bf16.msra.mxu0 %v860
    %893 = vmatpush.bf16.msra.mxu0 %v858
    %894 = vmatpush.bf16.msra.mxu0 %v856
    %895 = vmatmul.bf16.gmra.mxu0 %v872
    %v896 = vpop.f32.mrf.mxu0
    %v897 = vadd.f32 0.0, %v896
    %v898 = vpop.f32.mrf.mxu0
    %899 = vdwg.mxu0
    %v902 = vrot.slane %v897, 6
    %v903 = vsel %vm104, %v884, %v902
    %v905 = vadd.f32 %v821, %v903
    %v906 = vmul.f32 %v905, 0.5
    %v907 = vtanh.pop %v906
    %v908 = vmul.f32 %v907, 0.5
    %v909 = vadd.f32 %v908, 0.5
    %911 = vrot.lane.b32.xlu0 %v905, 64
    %v912 = vpop.permute.xlu0 %911
    %v913 = vrot.slane %v912, 2
    %v915 = vtanh.pop %v913
    %v916 = vmul.f32 %v909, %v808
    %v917 = vmul.f32 %v909, %v915
    %919 = vrot.lane.b32.xlu0 %v917, 64
    %v920 = vpop.permute.xlu0 %919
    %v922 = vadd.f32 %v916, %v920
    %v923 = vtanh.pop %v922
    %v925 = vrot.slane %v909, 2
    %928 = vrot.lane.b32.xlu0 %v923, 64
    %v929 = vpop.permute.xlu0 %928
    %v931 = vmul.f32 %v925, %v929
    %s932 = scalar_lea.vmem [#allocation2], 14
    %933 = vst.msk [vmem:[%s932] sm:$0x3] %vm134, %v931
    %v934 = vld [vmem:[#allocation2] sm:$0x3]
    %v935 = vld [vmem:[#allocation2 + $0x2] sm:$0x3]
    %v936 = vld [vmem:[#allocation2 + $0x4] sm:$0x3]
    %v937 = vld [vmem:[#allocation2 + $0x6] sm:$0x3]
    %v938 = vld [vmem:[#allocation2 + $0x8] sm:$0x3]
    %v939 = vld [vmem:[#allocation2 + $0xa] sm:$0x3]
    %v940 = vld [vmem:[#allocation2 + $0xc] sm:$0x3]
    %v941 = vld [vmem:[#allocation2 + $0xe] sm:$0x3]
    %v942 = vld [vmem:[%s2] sm:$0x3]
    %v943 = vld [vmem:[%s2 + $0x2] sm:$0x3]
    %v944 = vld [vmem:[%s2 + $0x4] sm:$0x3]
    %v945 = vld [vmem:[%s2 + $0x6] sm:$0x3]
    %v946 = vld [vmem:[%s2 + $0x8] sm:$0x3]
    %v947 = vld [vmem:[%s2 + $0xa] sm:$0x3]
    %v948 = vld [vmem:[%s2 + $0xc] sm:$0x3]
    %v949 = vld [vmem:[%s2 + $0xe] sm:$0x3]
    %v950 = vmul.f32 %v934, %v942
    %v951 = vmul.f32 %v935, %v943
    %v952 = vmul.f32 %v936, %v944
    %v953 = vmul.f32 %v937, %v945
    %v954 = vmul.f32 %v938, %v946
    %v955 = vmul.f32 %v939, %v947
    %v956 = vmul.f32 %v940, %v948
    %v957 = vmul.f32 %v941, %v949
    %v958 = vsel %vm134, %v950, 0.0
    %v959 = vsel %vm134, %v951, 0.0
    %v960 = vadd.f32 %v958, %v959
    %v961 = vsel %vm134, %v952, 0.0
    %v962 = vadd.f32 %v960, %v961
    %v963 = vsel %vm134, %v953, 0.0
    %v964 = vadd.f32 %v962, %v963
    %v965 = vsel %vm134, %v954, 0.0
    %v966 = vadd.f32 %v964, %v965
    %v967 = vsel %vm134, %v955, 0.0
    %v968 = vadd.f32 %v966, %v967
    %v969 = vsel %vm134, %v956, 0.0
    %v970 = vadd.f32 %v968, %v969
    %v971 = vsel %vm134, %v957, 0.0
    %v972 = vadd.f32 %v970, %v971
    %v973 = vmul.f32 %v972, 0.125
    %v974 = vld [vmem:[%s932] sm:$0x3]
    %vm975 = vcmask 261120
    %v976 = vsel %vm975, %v974, %v934
    %978 = vrot.lane.b32.xlu0 %v976, 64
    %v979 = vpop.permute.xlu0 %978
    %v981 = vsel %vm71, %v973, %v979
    %v982 = vpack.c.bf16 %v981, %v981
    %v983 = vld [vmem:[%s3] sm:$0xf]
    %v984 = vld [vmem:[%s3 + $0x4] sm:$0xf]
    %v985 = vld [vmem:[%s3 + $0x8] sm:$0xf]
    %v986 = vld [vmem:[%s3 + $0xc] sm:$0xf]
    %v987 = vld [vmem:[%s3 + $0x10] sm:$0xf]
    %v988 = vld [vmem:[%s3 + $0x14] sm:$0xf]
    %v989 = vld [vmem:[%s3 + $0x18] sm:$0xf]
    %v990 = vld [vmem:[%s3 + $0x1c] sm:$0xf]
    %v991 = vld [vmem:[%s3 + $0x20] sm:$0xf]
    %v992 = vld [vmem:[%s3 + $0x24] sm:$0xf]
    %v993 = vld [vmem:[%s3 + $0x28] sm:$0xf]
    %v994 = vld [vmem:[%s3 + $0x2c] sm:$0xf]
    %v995 = vld [vmem:[%s3 + $0x30] sm:$0xf]
    %v996 = vld [vmem:[%s3 + $0x34] sm:$0xf]
    %v997 = vld [vmem:[%s3 + $0x38] sm:$0xf]
    %v998 = vld [vmem:[%s3 + $0x3c] sm:$0xf]
    %v999 = vld [vmem:[%s4] sm:$0x1]
    %v1001 = vperm.slane %v999, 0
    %v1019 = vunpack.c.l.b16 %v983
    %v1020 = vunpack.c.l.b16 %v984
    %v1021 = vunpack.c.l.b16 %v985
    %v1022 = vunpack.c.l.b16 %v986
    %v1023 = vunpack.c.l.b16 %v987
    %v1024 = vunpack.c.l.b16 %v988
    %v1025 = vunpack.c.l.b16 %v989
    %v1026 = vunpack.c.l.b16 %v990
    %v1027 = vunpack.c.l.b16 %v991
    %v1028 = vunpack.c.l.b16 %v992
    %v1029 = vunpack.c.l.b16 %v993
    %v1030 = vunpack.c.l.b16 %v994
    %v1031 = vunpack.c.l.b16 %v995
    %v1032 = vunpack.c.l.b16 %v996
    %v1033 = vunpack.c.l.b16 %v997
    %v1034 = vunpack.c.l.b16 %v998
    %v1035 = vpack.c.b16 %v1020, %v1019
    %v1036 = vpack.c.b16 %v1022, %v1021
    %v1037 = vpack.c.b16 %v1024, %v1023
    %v1038 = vpack.c.b16 %v1026, %v1025
    %v1039 = vpack.c.b16 %v1028, %v1027
    %v1040 = vpack.c.b16 %v1030, %v1029
    %v1041 = vpack.c.b16 %v1032, %v1031
    %v1042 = vpack.c.b16 %v1034, %v1033
    %1051 = vmatpush.bf16.msra.mxu0 %v1042
    %1052 = vmatpush.bf16.msra.mxu0 %v1041
    %1053 = vmatpush.bf16.msra.mxu0 %v1040
    %1054 = vmatpush.bf16.msra.mxu0 %v1039
    %1055 = vmatpush.bf16.msra.mxu0 %v1038
    %1056 = vmatpush.bf16.msra.mxu0 %v1037
    %1057 = vmatpush.bf16.msra.mxu0 %v1036
    %1058 = vmatpush.bf16.msra.mxu0 %v1035
    %1059 = vmatmul.bf16.gmra.mxu0 %v982
    %v1060 = vpop.f32.mrf.mxu0
    %v1061 = vadd.f32 %v1001, %v1060
    %v1062 = vpop.f32.mrf.mxu0
    %1063 = vdwg.mxu0
    %vm1064 = vcmask 25600
    %v1065 = vsel %vm1064, %v1061, -inf
    %1066 = vmax.xlane.f32.xlu0 %v1065
    %v1067 = vpop.xlane.xlu0 %1066
    %v1068 = vsub.f32 %v1061, %v1067
    %v1069 = vmul.f32 %v1068, 1.442695
    %v1070 = vpow.pop %v1069
    %v1071 = vsel %vm1064, %v1070, 0.0
    %1072 = vadd.xlane.f32.xlu0 %v1071
    %v1073 = vpop.xlane.xlu0 %1072
    %v1074 = vlog2.pop %v1073
    %v1075 = vmul.f32 %v1074, 0.6931472
    %v1076 = vadd.f32 %v1067, %v1075
    %v1077 = vsub.f32 %v1061, %v1076
    %1078 = vst.msk [vmem:[#allocation3] sm:$0x3] %vm1064, %v1077
    // Predicated region
    $region22: #{bilstm_decoder_forward.1} parent=1 // pred_check
      _
    $region23: #{bilstm_decoder_forward.1} parent=1 // pred_check_branch
      %1080 = sbr.rel (0) target = $region25
    $region24: #{bilstm_decoder_forward.1} parent=1 // pred_region
      %1082 = vsyncadd [#allocation4], 0
      %s1084 = sshll.u32 [#allocation3], 4
      %s1085 = int_to_ptr.vmem [resolvable:$true] %s1084
      %s1086 = sshll.u32 %s5, 4
      %s1087 = int_to_ptr.hbm [resolvable:$true] %s1086
      %1089 = dma.vmem_to_hbm [thread:$0]  %s1085, 32, %s1087, [#allocation4]
    $region25: #{bilstm_decoder_forward.1} parent=1 // pred_fallthru
      _
    // Predicated region
    $region26: #{bilstm_decoder_forward.1} parent=1 // pred_check
      _
    $region27: #{bilstm_decoder_forward.1} parent=1 // pred_check_branch
      %1091 = sbr.rel (0) target = $region29
    $region28: #{bilstm_decoder_forward.1} parent=1 // pred_region
      %1093 = dma.done [#allocation4], 32
    $region29: #{bilstm_decoder_forward.1} parent=1 // pred_fallthru
      _
    %1094 = vsyncpa [#allocation4], 1

</llo_original>
